<compile_context>
chip_gen: v7x
topology: tpu7x:2x2x1
jax: 0.10.0
libtpu: 0.0.40
codegen_flags: <defaults>
</compile_context>

<pallas_src>
import numpy as np
import jax
import jax.numpy as jnp
from jax import lax
from jax.experimental import pallas as pl
from jax.experimental.pallas import tpu as pltpu


# ----------------------------- config --------------------------------------
class Cfg:
    JOCOR = True
    W = 0.5
    T = 4.0
    L = (1.0, 0.5, 0.3, 0.2, 0.7)       # coefficients for La..Le
    LOG_TARGET = False
    EPOCHS = 10
    GRADUAL = 5
    FORGET_RATE = 0.2
    DEVICE = "tpu"


# --------------------------- tiling helpers ---------------------------------
_PER_TILE_BUDGET = 1 << 20      # ~1 MiB per (TB, C) f32 logit tile


def _round_up(x, m):
    return ((x + m - 1) // m) * m


def _pick_tile_b(B, C):
    """Rows per batch tile.

    Prefer multiples of 128 (lane-dense (1, TB) output stores); fall back to
    multiples of 8 when C is huge so tiles still fit VMEM on all generations.
    """
    rows = _PER_TILE_BUDGET // (C * 4)
    if rows >= 128:
        tb = min((rows // 128) * 128, 1024)      # amortize ~0.35us/step grid cost
        tb = min(tb, _round_up(B, 128))          # don't over-pad tiny batches
    else:
        # TODO(synk): very large C would benefit from tiling the class axis
        # with an in-kernel accumulator; for now only shrink the batch tile.
        tb = max(8, (rows // 8) * 8)
        tb = min(tb, _round_up(B, 8))
    return int(tb)


# ----------------------------- kernel --------------------------------------
def _make_kernel(T, W, L, log_target):
    T = float(T)
    W = float(W)
    L = tuple(float(v) for v in L)
    T2 = T * T
    invT = 1.0 / T
    del log_target   # both settings are mathematically identical here (see header)

    def kernel(ys_ref, yt_ref, yts_ref, lbl_ref,
               o_loss_ref, o_cls_ref, o_kd_ref):
        ys = ys_ref[...].astype(jnp.float32)
        yt = yt_ref[...].astype(jnp.float32)
        yts = yts_ref[...].astype(jnp.float32)
        lbl = lbl_ref[...]                       # (TB, 1) int32

        TB, C = ys.shape

        def lsm(x):                              # log-softmax only
            m = jnp.max(x, axis=1, keepdims=True)
            z = x - m
            e = jnp.exp(z)
            s = jnp.sum(e, axis=1, keepdims=True)
            return z - jnp.log(s)

        def lsm_sm(x):                           # log-softmax + softmax, exp reused
            m = jnp.max(x, axis=1, keepdims=True)
            z = x - m
            e = jnp.exp(z)
            s = jnp.sum(e, axis=1, keepdims=True)
            return z - jnp.log(s), e * (1.0 / s)

        # in-kernel one-hot mask: cheap VPU iota/compare, no extra HBM stream
        cls_ids = lax.broadcasted_iota(jnp.int32, (TB, C), 1)
        mask = (cls_ids == lbl).astype(jnp.float32)

        # --- cross-entropy terms (no temperature) ---
        ls_s = lsm(ys)
        ls_ts = lsm(yts)

        # --- temperature-scaled distributions (probs reuse the exp) ---
        lsT_s, pT_s = lsm_sm(ys * invT)
        lsT_t, pT_t = lsm_sm(yt * invT)
        lsT_ts, pT_ts = lsm_sm(yts * invT)

        diff = yts - yt

        # Fused elementwise integrand for loss_kd; ONE lane reduction:
        #   La = T^2 * sum pT_s  * (lsT_s  - lsT_ts)     (KD(y_ts, y_s))
        #   Lb = T^2 * sum pT_ts * (lsT_ts - lsT_s)      (KD(y_s, y_ts))
        #   Lc = -sum onehot * log_softmax(y_ts)         (CE(y_ts, y))
        #   Ld = mean (y_ts - y_t)^2
        #   Le = T^2 * sum pT_t  * (lsT_t  - lsT_s)      (KD(y_s, y_t))
        kd_elem = ((L[0] * T2) * (pT_s * (lsT_s - lsT_ts))
                   + (L[1] * T2) * (pT_ts * (lsT_ts - lsT_s))
                   - L[2] * (mask * ls_ts)
                   + (L[3] / C) * (diff * diff)
                   + (L[4] * T2) * (pT_t * (lsT_t - lsT_s)))
        loss_kd = jnp.sum(kd_elem, axis=1)              # (TB,)
        loss_cls = -jnp.sum(mask * ls_s, axis=1)        # (TB,)  CE(y_s, y)
        loss = loss_cls + W * loss_kd

        out_block_shape = o_loss_ref.shape              # (1, TB) or (TB, 1), static
        o_loss_ref[...] = loss.reshape(out_block_shape)
        o_cls_ref[...] = loss_cls.reshape(out_block_shape)
        o_kd_ref[...] = loss_kd.reshape(out_block_shape)

    return kernel


def smooth_loss_per_sample(y_s, y_t, y_ts, y, cfg):
    """Runs the tiled Pallas kernel; returns per-sample (loss, loss_cls, loss_kd)."""
    B, C = y_s.shape
    TB = _pick_tile_b(B, C)
    B_pad = _round_up(B, TB)
    pad = B_pad - B
    if pad:
        zpad = ((0, pad), (0, 0))
        y_s = jnp.pad(y_s, zpad)
        y_t = jnp.pad(y_t, zpad)
        y_ts = jnp.pad(y_ts, zpad)
        y = jnp.pad(y, ((0, pad),))
    labels = y.astype(jnp.int32).reshape(B_pad, 1)

    kernel = _make_kernel(cfg.T, cfg.W, cfg.L, cfg.LOG_TARGET)

    logit_spec = pl.BlockSpec((TB, C), lambda i: (i, 0))
    label_spec = pl.BlockSpec((TB, 1), lambda i: (i, 0))

    lane_dense = (TB % 128 == 0)
    if lane_dense:
        out_spec = pl.BlockSpec((1, TB), lambda i: (0, i))
        out_shape = tuple(jax.ShapeDtypeStruct((1, B_pad), jnp.float32)
                          for _ in range(3))
    else:
        out_spec = pl.BlockSpec((TB, 1), lambda i: (i, 0))
        out_shape = tuple(jax.ShapeDtypeStruct((B_pad, 1), jnp.float32)
                          for _ in range(3))

    # Explicit scoped-VMEM budget: double-buffered inputs + in-kernel f32
    # temporaries, clamped so it stays safe on v7x's 64 MiB physical VMEM.
    tile_f32_bytes = TB * C * 4
    vmem_limit = int(min(48 << 20, max(16 << 20, 24 * tile_f32_bytes)))

    loss, loss_cls, loss_kd = pl.pallas_call(
        kernel,
        out_shape=out_shape,
        grid_spec=pltpu.PrefetchScalarGridSpec(
            num_scalar_prefetch=0,
            grid=(B_pad // TB,),
            in_specs=[logit_spec, logit_spec, logit_spec, label_spec],
            out_specs=(out_spec, out_spec, out_spec),
        ),
        compiler_params=pltpu.CompilerParams(
            dimension_semantics=("parallel",),
            vmem_limit_bytes=vmem_limit),
    )(y_s, y_t, y_ts, labels)

    # drop padded rows before any host-side mean / JOCOR selection
    if lane_dense:
        return loss[0, :B], loss_cls[0, :B], loss_kd[0, :B]
    return loss[:B, 0], loss_cls[:B, 0], loss_kd[:B, 0]


class SmoothLoss:
    def __init__(self, cfg):
        self.cfg = cfg
        self.JOCOR = cfg.JOCOR
        self.W = cfg.W
        if self.JOCOR:
            self.forget_scheduler = np.zeros(cfg.EPOCHS)
            self.forget_scheduler[:cfg.GRADUAL] = np.linspace(
                cfg.FORGET_RATE, 0, cfg.GRADUAL)

    def __call__(self, y_s, y_t, y_ts, y, ep):
        loss, loss_cls, loss_kd = smooth_loss_per_sample(
            y_s, y_t, y_ts, y, self.cfg)

        if self.JOCOR and self.forget_scheduler[ep] > 0:
            # JOCOR small-loss selection (plain JAX glue; sort is not a
            # Pallas-friendly op).  num_remember is static (host-side ep).
            remember_rate = 1.0 - float(self.forget_scheduler[ep])
            num_remember = int(remember_rate * loss.shape[0])
            ind_sorted = jnp.argsort(loss)
            ind_update = ind_sorted[:num_remember]
            loss = loss[ind_update]
            loss_cls = loss_cls[ind_update]
            loss_kd = loss_kd[ind_update]

        return jnp.mean(loss), jnp.mean(loss_cls), jnp.mean(loss_kd)


# ------------------------ pure-JAX reference --------------------------------
def _reference(y_s, y_t, y_ts, y, cfg, forget_scheduler, ep):
    T, W, L = cfg.T, cfg.W, cfg.L

    def lsm(x):
        return jax.nn.log_softmax(x, axis=1)

    oh = jax.nn.one_hot(y, y_s.shape[1], dtype=jnp.float32)
    loss_cls = -jnp.sum(oh * lsm(y_s), axis=1)
    Lc = -jnp.sum(oh * lsm(y_ts), axis=1)

    lsT_s, lsT_t, lsT_ts = lsm(y_s / T), lsm(y_t / T), lsm(y_ts / T)
    p_s, p_t, p_ts = jnp.exp(lsT_s), jnp.exp(lsT_t), jnp.exp(lsT_ts)
    T2 = T * T
    La = T2 * jnp.sum(p_s * (lsT_s - lsT_ts), axis=1)
    Lb = T2 * jnp.sum(p_ts * (lsT_ts - lsT_s), axis=1)
    Le = T2 * jnp.sum(p_t * (lsT_t - lsT_s), axis=1)
    Ld = jnp.mean((y_ts - y_t) ** 2, axis=1)

    loss_kd = L[0] * La + L[1] * Lb + L[2] * Lc + L[3] * Ld + L[4] * Le
    loss = loss_cls + W * loss_kd

    if cfg.JOCOR and forget_scheduler[ep] > 0:
        remember_rate = 1.0 - float(forget_scheduler[ep])
        num_remember = int(remember_rate * loss.shape[0])
        ind = jnp.argsort(loss)[:num_remember]
        loss, loss_cls, loss_kd = loss[ind], loss_cls[ind], loss_kd[ind]

    return jnp.mean(loss), jnp.mean(loss_cls), jnp.mean(loss_kd)


# ------------------------------- main ---------------------------------------
if __name__ == "__main__":
    cfg = Cfg()
    B, C = 8, 16
    ep = 0  # forget_scheduler[0] = FORGET_RATE > 0 -> JOCOR branch exercised

    key = jax.random.PRNGKey(0)
    k1, k2, k3, k4 = jax.random.split(key, 4)
    y_s = jax.random.normal(k1, (B, C), dtype=jnp.float32)   # student logits
    y_t = jax.random.normal(k2, (B, C), dtype=jnp.float32)   # teacher logits
    y_ts = jax.random.normal(k3, (B, C), dtype=jnp.float32)  # teacher-assistant logits
    y = jax.random.randint(k4, (B,), 0, C, dtype=jnp.int32)  # labels

    module = SmoothLoss(cfg)
    loss, loss_cls, loss_kd = module(y_s, y_t, y_ts, y, ep)
    jax.block_until_ready((loss, loss_cls, loss_kd))

    ref = _reference(y_s, y_t, y_ts, y, cfg, module.forget_scheduler, ep)
    np.testing.assert_allclose(np.asarray(loss), np.asarray(ref[0]), rtol=1e-5, atol=1e-5)
    np.testing.assert_allclose(np.asarray(loss_cls), np.asarray(ref[1]), rtol=1e-5, atol=1e-5)
    np.testing.assert_allclose(np.asarray(loss_kd), np.asarray(ref[2]), rtol=1e-5, atol=1e-5)

    print("KERNEL_OK")
</pallas_src>

<mosaic_0001>
module attributes {stable_mosaic.version = 11 : i64} {
  func.func @kernel(%arg0: i32, %arg1: memref<128x16xf32, #tpu.memory_space<vmem>>, %arg2: memref<128x16xf32, #tpu.memory_space<vmem>>, %arg3: memref<128x16xf32, #tpu.memory_space<vmem>>, %arg4: memref<128x1xi32, #tpu.memory_space<vmem>>, %arg5: memref<1x128xf32, #tpu.memory_space<vmem>>, %arg6: memref<1x128xf32, #tpu.memory_space<vmem>>, %arg7: memref<1x128xf32, #tpu.memory_space<vmem>>) attributes {dimension_semantics = [#tpu.dimension_semantics<parallel>], iteration_bounds = array<i64: 1>, scalar_prefetch = 0 : i64, scratch_operands = 0 : i64, tpu.core_type = #tpu.core_type<tc>, window_params = [{transform_indices = @transform_0, window_bounds = array<i64: 128, 16>}, {transform_indices = @transform_1, window_bounds = array<i64: 128, 16>}, {transform_indices = @transform_2, window_bounds = array<i64: 128, 16>}, {transform_indices = @transform_3, window_bounds = array<i64: 128, 1>}, {transform_indices = @transform_4, window_bounds = array<i64: 1, 128>}, {transform_indices = @transform_5, window_bounds = array<i64: 1, 128>}, {transform_indices = @transform_6, window_bounds = array<i64: 1, 128>}]} {
    %c0 = arith.constant 0 : index
    %c0_0 = arith.constant 0 : index
    %0 = vector.load %arg1[%c0, %c0_0] : memref<128x16xf32, #tpu.memory_space<vmem>>, vector<128x16xf32>
    %c0_1 = arith.constant 0 : index
    %c0_2 = arith.constant 0 : index
    %1 = vector.load %arg2[%c0_1, %c0_2] : memref<128x16xf32, #tpu.memory_space<vmem>>, vector<128x16xf32>
    %c0_3 = arith.constant 0 : index
    %c0_4 = arith.constant 0 : index
    %2 = vector.load %arg3[%c0_3, %c0_4] : memref<128x16xf32, #tpu.memory_space<vmem>>, vector<128x16xf32>
    %c0_5 = arith.constant 0 : index
    %c0_6 = arith.constant 0 : index
    %3 = vector.load %arg4[%c0_5, %c0_6] : memref<128x1xi32, #tpu.memory_space<vmem>>, vector<128x1xi32>
    %4 = tpu.iota {dimensions = array<i32: 1>} : vector<128x16xi32>
    %5 = vector.broadcast %3 : vector<128x1xi32> to vector<128x16xi32>
    %6 = arith.cmpi eq, %4, %5 : vector<128x16xi32>
    %7 = arith.extui %6 : vector<128x16xi1> to vector<128x16xi32>
    %8 = arith.sitofp %7 : vector<128x16xi32> to vector<128x16xf32>
    %cst = arith.constant dense<0xFF800000> : vector<128xf32>
    %9 = vector.multi_reduction <maximumf>, %0, %cst [1] : vector<128x16xf32> to vector<128xf32>
    %10 = vector.shape_cast %9 : vector<128xf32> to vector<128x1xf32>
    %11 = vector.broadcast %10 : vector<128x1xf32> to vector<128x16xf32>
    %12 = arith.subf %0, %11 : vector<128x16xf32>
    %13 = math.exp %12 : vector<128x16xf32>
    %cst_7 = arith.constant dense<0.000000e+00> : vector<128xf32>
    %14 = vector.multi_reduction <add>, %13, %cst_7 [1] : vector<128x16xf32> to vector<128xf32>
    %15 = vector.shape_cast %14 : vector<128xf32> to vector<128x1xf32>
    %16 = math.log %15 : vector<128x1xf32>
    %17 = vector.broadcast %16 : vector<128x1xf32> to vector<128x16xf32>
    %18 = arith.subf %12, %17 : vector<128x16xf32>
    %cst_8 = arith.constant dense<0xFF800000> : vector<128xf32>
    %19 = vector.multi_reduction <maximumf>, %2, %cst_8 [1] : vector<128x16xf32> to vector<128xf32>
    %20 = vector.shape_cast %19 : vector<128xf32> to vector<128x1xf32>
    %21 = vector.broadcast %20 : vector<128x1xf32> to vector<128x16xf32>
    %22 = arith.subf %2, %21 : vector<128x16xf32>
    %23 = math.exp %22 : vector<128x16xf32>
    %cst_9 = arith.constant dense<0.000000e+00> : vector<128xf32>
    %24 = vector.multi_reduction <add>, %23, %cst_9 [1] : vector<128x16xf32> to vector<128xf32>
    %25 = vector.shape_cast %24 : vector<128xf32> to vector<128x1xf32>
    %26 = math.log %25 : vector<128x1xf32>
    %27 = vector.broadcast %26 : vector<128x1xf32> to vector<128x16xf32>
    %28 = arith.subf %22, %27 : vector<128x16xf32>
    %cst_10 = arith.constant 2.500000e-01 : f32
    %29 = vector.broadcast %cst_10 : f32 to vector<128x16xf32>
    %30 = arith.mulf %0, %29 : vector<128x16xf32>
    %cst_11 = arith.constant dense<0xFF800000> : vector<128xf32>
    %31 = vector.multi_reduction <maximumf>, %30, %cst_11 [1] : vector<128x16xf32> to vector<128xf32>
    %32 = vector.shape_cast %31 : vector<128xf32> to vector<128x1xf32>
    %33 = vector.broadcast %32 : vector<128x1xf32> to vector<128x16xf32>
    %34 = arith.subf %30, %33 : vector<128x16xf32>
    %35 = math.exp %34 : vector<128x16xf32>
    %cst_12 = arith.constant dense<0.000000e+00> : vector<128xf32>
    %36 = vector.multi_reduction <add>, %35, %cst_12 [1] : vector<128x16xf32> to vector<128xf32>
    %37 = vector.shape_cast %36 : vector<128xf32> to vector<128x1xf32>
    %38 = math.log %37 : vector<128x1xf32>
    %39 = vector.broadcast %38 : vector<128x1xf32> to vector<128x16xf32>
    %40 = arith.subf %34, %39 : vector<128x16xf32>
    %cst_13 = arith.constant 1.000000e+00 : f32
    %41 = vector.broadcast %cst_13 : f32 to vector<128x1xf32>
    %42 = arith.divf %41, %37 : vector<128x1xf32>
    %43 = vector.broadcast %42 : vector<128x1xf32> to vector<128x16xf32>
    %44 = arith.mulf %35, %43 : vector<128x16xf32>
    %cst_14 = arith.constant 2.500000e-01 : f32
    %45 = vector.broadcast %cst_14 : f32 to vector<128x16xf32>
    %46 = arith.mulf %1, %45 : vector<128x16xf32>
    %cst_15 = arith.constant dense<0xFF800000> : vector<128xf32>
    %47 = vector.multi_reduction <maximumf>, %46, %cst_15 [1] : vector<128x16xf32> to vector<128xf32>
    %48 = vector.shape_cast %47 : vector<128xf32> to vector<128x1xf32>
    %49 = vector.broadcast %48 : vector<128x1xf32> to vector<128x16xf32>
    %50 = arith.subf %46, %49 : vector<128x16xf32>
    %51 = math.exp %50 : vector<128x16xf32>
    %cst_16 = arith.constant dense<0.000000e+00> : vector<128xf32>
    %52 = vector.multi_reduction <add>, %51, %cst_16 [1] : vector<128x16xf32> to vector<128xf32>
    %53 = vector.shape_cast %52 : vector<128xf32> to vector<128x1xf32>
    %54 = math.log %53 : vector<128x1xf32>
    %55 = vector.broadcast %54 : vector<128x1xf32> to vector<128x16xf32>
    %56 = arith.subf %50, %55 : vector<128x16xf32>
    %cst_17 = arith.constant 1.000000e+00 : f32
    %57 = vector.broadcast %cst_17 : f32 to vector<128x1xf32>
    %58 = arith.divf %57, %53 : vector<128x1xf32>
    %59 = vector.broadcast %58 : vector<128x1xf32> to vector<128x16xf32>
    %60 = arith.mulf %51, %59 : vector<128x16xf32>
    %cst_18 = arith.constant 2.500000e-01 : f32
    %61 = vector.broadcast %cst_18 : f32 to vector<128x16xf32>
    %62 = arith.mulf %2, %61 : vector<128x16xf32>
    %cst_19 = arith.constant dense<0xFF800000> : vector<128xf32>
    %63 = vector.multi_reduction <maximumf>, %62, %cst_19 [1] : vector<128x16xf32> to vector<128xf32>
    %64 = vector.shape_cast %63 : vector<128xf32> to vector<128x1xf32>
    %65 = vector.broadcast %64 : vector<128x1xf32> to vector<128x16xf32>
    %66 = arith.subf %62, %65 : vector<128x16xf32>
    %67 = math.exp %66 : vector<128x16xf32>
    %cst_20 = arith.constant dense<0.000000e+00> : vector<128xf32>
    %68 = vector.multi_reduction <add>, %67, %cst_20 [1] : vector<128x16xf32> to vector<128xf32>
    %69 = vector.shape_cast %68 : vector<128xf32> to vector<128x1xf32>
    %70 = math.log %69 : vector<128x1xf32>
    %71 = vector.broadcast %70 : vector<128x1xf32> to vector<128x16xf32>
    %72 = arith.subf %66, %71 : vector<128x16xf32>
    %cst_21 = arith.constant 1.000000e+00 : f32
    %73 = vector.broadcast %cst_21 : f32 to vector<128x1xf32>
    %74 = arith.divf %73, %69 : vector<128x1xf32>
    %75 = vector.broadcast %74 : vector<128x1xf32> to vector<128x16xf32>
    %76 = arith.mulf %67, %75 : vector<128x16xf32>
    %77 = arith.subf %2, %1 : vector<128x16xf32>
    %78 = arith.subf %40, %72 : vector<128x16xf32>
    %79 = arith.mulf %44, %78 : vector<128x16xf32>
    %cst_22 = arith.constant 1.600000e+01 : f32
    %80 = vector.broadcast %cst_22 : f32 to vector<128x16xf32>
    %81 = arith.mulf %80, %79 : vector<128x16xf32>
    %82 = arith.subf %72, %40 : vector<128x16xf32>
    %83 = arith.mulf %76, %82 : vector<128x16xf32>
    %cst_23 = arith.constant 8.000000e+00 : f32
    %84 = vector.broadcast %cst_23 : f32 to vector<128x16xf32>
    %85 = arith.mulf %84, %83 : vector<128x16xf32>
    %86 = arith.addf %81, %85 : vector<128x16xf32>
    %87 = arith.mulf %8, %28 : vector<128x16xf32>
    %cst_24 = arith.constant 3.000000e-01 : f32
    %88 = vector.broadcast %cst_24 : f32 to vector<128x16xf32>
    %89 = arith.mulf %88, %87 : vector<128x16xf32>
    %90 = arith.subf %86, %89 : vector<128x16xf32>
    %91 = arith.mulf %77, %77 : vector<128x16xf32>
    %cst_25 = arith.constant 1.250000e-02 : f32
    %92 = vector.broadcast %cst_25 : f32 to vector<128x16xf32>
    %93 = arith.mulf %92, %91 : vector<128x16xf32>
    %94 = arith.addf %90, %93 : vector<128x16xf32>
    %95 = arith.subf %56, %40 : vector<128x16xf32>
    %96 = arith.mulf %60, %95 : vector<128x16xf32>
    %cst_26 = arith.constant 1.120000e+01 : f32
    %97 = vector.broadcast %cst_26 : f32 to vector<128x16xf32>
    %98 = arith.mulf %97, %96 : vector<128x16xf32>
    %99 = arith.addf %94, %98 : vector<128x16xf32>
    %cst_27 = arith.constant dense<0.000000e+00> : vector<128xf32>
    %100 = vector.multi_reduction <add>, %99, %cst_27 [1] : vector<128x16xf32> to vector<128xf32>
    %101 = arith.mulf %8, %18 : vector<128x16xf32>
    %cst_28 = arith.constant dense<0.000000e+00> : vector<128xf32>
    %102 = vector.multi_reduction <add>, %101, %cst_28 [1] : vector<128x16xf32> to vector<128xf32>
    %cst_29 = arith.constant 0.000000e+00 : f32
    %103 = vector.broadcast %cst_29 : f32 to vector<128xf32>
    %104 = arith.subf %103, %102 : vector<128xf32>
    %cst_30 = arith.constant 5.000000e-01 : f32
    %105 = vector.broadcast %cst_30 : f32 to vector<128xf32>
    %106 = arith.mulf %105, %100 : vector<128xf32>
    %107 = arith.addf %104, %106 : vector<128xf32>
    %108 = vector.shape_cast %107 : vector<128xf32> to vector<1x128xf32>
    %c0_31 = arith.constant 0 : index
    %c0_32 = arith.constant 0 : index
    %109 = vector.load %arg5[%c0_31, %c0_32] : memref<1x128xf32, #tpu.memory_space<vmem>>, vector<1x128xf32>
    tpu.vector_store %arg5[%c0_31, %c0_32], %108 {strides = array<i32>} : memref<1x128xf32, #tpu.memory_space<vmem>>, vector<1x128xf32>,
    %110 = vector.shape_cast %104 : vector<128xf32> to vector<1x128xf32>
    %c0_33 = arith.constant 0 : index
    %c0_34 = arith.constant 0 : index
    %111 = vector.load %arg6[%c0_33, %c0_34] : memref<1x128xf32, #tpu.memory_space<vmem>>, vector<1x128xf32>
    tpu.vector_store %arg6[%c0_33, %c0_34], %110 {strides = array<i32>} : memref<1x128xf32, #tpu.memory_space<vmem>>, vector<1x128xf32>,
    %112 = vector.shape_cast %100 : vector<128xf32> to vector<1x128xf32>
    %c0_35 = arith.constant 0 : index
    %c0_36 = arith.constant 0 : index
    %113 = vector.load %arg7[%c0_35, %c0_36] : memref<1x128xf32, #tpu.memory_space<vmem>>, vector<1x128xf32>
    tpu.vector_store %arg7[%c0_35, %c0_36], %112 {strides = array<i32>} : memref<1x128xf32, #tpu.memory_space<vmem>>, vector<1x128xf32>,
    return
  }
  func.func @transform_0(%arg0: i32) -> (i32, i32) {
    %c0_i32 = arith.constant 0 : i32
    %c0_i32_0 = arith.constant 0 : i32
    return %arg0, %c0_i32 : i32, i32
  }
  func.func @transform_1(%arg0: i32) -> (i32, i32) {
    %c0_i32 = arith.constant 0 : i32
    %c0_i32_0 = arith.constant 0 : i32
    return %arg0, %c0_i32 : i32, i32
  }
  func.func @transform_2(%arg0: i32) -> (i32, i32) {
    %c0_i32 = arith.constant 0 : i32
    %c0_i32_0 = arith.constant 0 : i32
    return %arg0, %c0_i32 : i32, i32
  }
  func.func @transform_3(%arg0: i32) -> (i32, i32) {
    %c0_i32 = arith.constant 0 : i32
    %c0_i32_0 = arith.constant 0 : i32
    return %arg0, %c0_i32 : i32, i32
  }
  func.func @transform_4(%arg0: i32) -> (i32, i32) {
    %c0_i32 = arith.constant 0 : i32
    %c0_i32_0 = arith.constant 0 : i32
    return %c0_i32, %arg0 : i32, i32
  }
  func.func @transform_5(%arg0: i32) -> (i32, i32) {
    %c0_i32 = arith.constant 0 : i32
    %c0_i32_0 = arith.constant 0 : i32
    return %c0_i32, %arg0 : i32, i32
  }
  func.func @transform_6(%arg0: i32) -> (i32, i32) {
    %c0_i32 = arith.constant 0 : i32
    %c0_i32_0 = arith.constant 0 : i32
    return %c0_i32, %arg0 : i32, i32
  }
}

</mosaic_0001>

<llo_original>
// kernel: tpu_custom_call.1
$region0: #{tpu_custom_call.1}
  #allocation0 [shape = 'u32[]', space=smem, size = 0x4, offset = 0x4, fixed_abs, tag = 'smem constant byte address 0x4 - core index']
  #allocation1 [shape = 'u32[144,128]{1,0:T(1,128)}', space=vmem, size = 0x12000, scoped, tag = 'internal scratch']
  %s0 = inlined_call_operand.vmem [shape: f32[128,16], index: 0, kind: input, shape index: {}]
  %s1 = inlined_call_operand.vmem [shape: f32[128,16], index: 1, kind: input, shape index: {}]
  %s2 = inlined_call_operand.vmem [shape: f32[128,16], index: 2, kind: input, shape index: {}]
  %s3 = inlined_call_operand.vmem [shape: s32[128,1], index: 3, kind: input, shape index: {}]
  %s4 = inlined_call_operand.hbm [shape: f32[1,128], index: 4, kind: output, shape index: {0}]
  %s5 = inlined_call_operand.hbm [shape: f32[1,128], index: 5, kind: output, shape index: {1}]
  %s6 = inlined_call_operand.hbm [shape: f32[1,128], index: 6, kind: output, shape index: {2}]
  %7 = xla_tuple %s4, %s5, %s6
  %s8 = sld [smem:[#allocation0]]
  $region42: #{tpu_custom_call.1} parent=0
    _
  %s10 = ssub.s32 1, %s8
  %s11 = scalar_select 0, %s10, %s8
  $region1: #{tpu_custom_call.1} parent=0
    #allocation2 [shape = 'u8[512]{0}', space=vmem, size = 0x400, scoped, tag = 'output window, operand 0, single buffered']
    #allocation3 [shape = 's32[1]{0}', space=sflag, size = 0x4, scoped, tag = 'scoped memory for tpu_custom_call.1']
    #allocation4 [shape = 'u8[512]{0}', space=vmem, size = 0x400, scoped, tag = 'output window, operand 1, single buffered']
    #allocation5 [shape = 's32[1]{0}', space=sflag, size = 0x4, scoped, tag = 'scoped memory for tpu_custom_call.1']
    #allocation6 [shape = 'u8[512]{0}', space=vmem, size = 0x400, scoped, tag = 'output window, operand 2, single buffered']
    %12 = vsyncpa [#allocation3], 0
    %13 = vsyncpa [#allocation5], 0
    // Predicated region
    $region2: #{tpu_custom_call.1} parent=1 // pred_check
      _
    $region3: #{tpu_custom_call.1} parent=1 // pred_check_branch
      %15 = sbr.rel (0) target = $region5
    $region4: #{tpu_custom_call.1} parent=1 // pred_region
      _
    $region5: #{tpu_custom_call.1} parent=1 // pred_fallthru
      _
    // Predicated region
    $region6: #{tpu_custom_call.1} parent=1 // pred_check
      _
    $region7: #{tpu_custom_call.1} parent=1 // pred_check_branch
      %17 = sbr.rel (0) target = $region9
    $region8: #{tpu_custom_call.1} parent=1 // pred_region
      _
    $region9: #{tpu_custom_call.1} parent=1 // pred_fallthru
      _
    // Predicated region
    $region10: #{tpu_custom_call.1} parent=1 // pred_check
      _
    $region11: #{tpu_custom_call.1} parent=1 // pred_check_branch
      %19 = sbr.rel (0) target = $region13
    $region12: #{tpu_custom_call.1} parent=1 // pred_region
      _
    $region13: #{tpu_custom_call.1} parent=1 // pred_fallthru
      _
    // Predicated region
    $region14: #{tpu_custom_call.1} parent=1 // pred_check
      _
    $region15: #{tpu_custom_call.1} parent=1 // pred_check_branch
      %21 = sbr.rel (0) target = $region17
    $region16: #{tpu_custom_call.1} parent=1 // pred_region
      _
    $region17: #{tpu_custom_call.1} parent=1 // pred_fallthru
      _
    %v22 = vld [vmem:[%s0] sm:$0xff]
    %v23 = vld [vmem:[%s0 + $0x8] sm:$0xff]
    %v24 = vld [vmem:[%s0 + $0x10] sm:$0xff]
    %v25 = vld [vmem:[%s0 + $0x18] sm:$0xff]
    %v26 = vld [vmem:[%s0 + $0x20] sm:$0xff]
    %v27 = vld [vmem:[%s0 + $0x28] sm:$0xff]
    %v28 = vld [vmem:[%s0 + $0x30] sm:$0xff]
    %v29 = vld [vmem:[%s0 + $0x38] sm:$0xff]
    %v30 = vld [vmem:[%s0 + $0x40] sm:$0xff]
    %v31 = vld [vmem:[%s0 + $0x48] sm:$0xff]
    %v32 = vld [vmem:[%s0 + $0x50] sm:$0xff]
    %v33 = vld [vmem:[%s0 + $0x58] sm:$0xff]
    %v34 = vld [vmem:[%s0 + $0x60] sm:$0xff]
    %v35 = vld [vmem:[%s0 + $0x68] sm:$0xff]
    %v36 = vld [vmem:[%s0 + $0x70] sm:$0xff]
    %v37 = vld [vmem:[%s0 + $0x78] sm:$0xff]
    %v38 = vld [vmem:[%s1] sm:$0xff]
    %v39 = vld [vmem:[%s1 + $0x8] sm:$0xff]
    %v40 = vld [vmem:[%s1 + $0x10] sm:$0xff]
    %v41 = vld [vmem:[%s1 + $0x18] sm:$0xff]
    %v42 = vld [vmem:[%s1 + $0x20] sm:$0xff]
    %v43 = vld [vmem:[%s1 + $0x28] sm:$0xff]
    %v44 = vld [vmem:[%s1 + $0x30] sm:$0xff]
    %v45 = vld [vmem:[%s1 + $0x38] sm:$0xff]
    %v46 = vld [vmem:[%s1 + $0x40] sm:$0xff]
    %v47 = vld [vmem:[%s1 + $0x48] sm:$0xff]
    %v48 = vld [vmem:[%s1 + $0x50] sm:$0xff]
    %v49 = vld [vmem:[%s1 + $0x58] sm:$0xff]
    %v50 = vld [vmem:[%s1 + $0x60] sm:$0xff]
    %v51 = vld [vmem:[%s1 + $0x68] sm:$0xff]
    %v52 = vld [vmem:[%s1 + $0x70] sm:$0xff]
    %v53 = vld [vmem:[%s1 + $0x78] sm:$0xff]
    %v54 = vld [vmem:[%s2] sm:$0xff]
    %v55 = vld [vmem:[%s2 + $0x8] sm:$0xff]
    %v56 = vld [vmem:[%s2 + $0x10] sm:$0xff]
    %v57 = vld [vmem:[%s2 + $0x18] sm:$0xff]
    %v58 = vld [vmem:[%s2 + $0x20] sm:$0xff]
    %v59 = vld [vmem:[%s2 + $0x28] sm:$0xff]
    %v60 = vld [vmem:[%s2 + $0x30] sm:$0xff]
    %v61 = vld [vmem:[%s2 + $0x38] sm:$0xff]
    %v62 = vld [vmem:[%s2 + $0x40] sm:$0xff]
    %v63 = vld [vmem:[%s2 + $0x48] sm:$0xff]
    %v64 = vld [vmem:[%s2 + $0x50] sm:$0xff]
    %v65 = vld [vmem:[%s2 + $0x58] sm:$0xff]
    %v66 = vld [vmem:[%s2 + $0x60] sm:$0xff]
    %v67 = vld [vmem:[%s2 + $0x68] sm:$0xff]
    %v68 = vld [vmem:[%s2 + $0x70] sm:$0xff]
    %v69 = vld [vmem:[%s2 + $0x78] sm:$0xff]
    %v70 = vld [vmem:[%s3] sm:$0xff]
    %v71 = vld [vmem:[%s3 + $0x8] sm:$0xff]
    %v72 = vld [vmem:[%s3 + $0x10] sm:$0xff]
    %v73 = vld [vmem:[%s3 + $0x18] sm:$0xff]
    %v74 = vld [vmem:[%s3 + $0x20] sm:$0xff]
    %v75 = vld [vmem:[%s3 + $0x28] sm:$0xff]
    %v76 = vld [vmem:[%s3 + $0x30] sm:$0xff]
    %v77 = vld [vmem:[%s3 + $0x38] sm:$0xff]
    %v78 = vld [vmem:[%s3 + $0x40] sm:$0xff]
    %v79 = vld [vmem:[%s3 + $0x48] sm:$0xff]
    %v80 = vld [vmem:[%s3 + $0x50] sm:$0xff]
    %v81 = vld [vmem:[%s3 + $0x58] sm:$0xff]
    %v82 = vld [vmem:[%s3 + $0x60] sm:$0xff]
    %v83 = vld [vmem:[%s3 + $0x68] sm:$0xff]
    %v84 = vld [vmem:[%s3 + $0x70] sm:$0xff]
    %v85 = vld [vmem:[%s3 + $0x78] sm:$0xff]
    %v86 = vlaneseq
    %v87 = vand.u32 %v86, 127
    %88 = vset.pattern.permute.xlu0 0
    %89 = vperm.xlu0 %88, %v70
    %v90 = vpop.permute.xlu0 %89
    %91 = vset.pattern.permute.xlu0 0
    %92 = vperm.xlu0 %91, %v71
    %v93 = vpop.permute.xlu0 %92
    %94 = vset.pattern.permute.xlu0 0
    %95 = vperm.xlu0 %94, %v72
    %v96 = vpop.permute.xlu0 %95
    %97 = vset.pattern.permute.xlu0 0
    %98 = vperm.xlu0 %97, %v73
    %v99 = vpop.permute.xlu0 %98
    %100 = vset.pattern.permute.xlu0 0
    %101 = vperm.xlu0 %100, %v74
    %v102 = vpop.permute.xlu0 %101
    %103 = vset.pattern.permute.xlu0 0
    %104 = vperm.xlu0 %103, %v75
    %v105 = vpop.permute.xlu0 %104
    %106 = vset.pattern.permute.xlu0 0
    %107 = vperm.xlu0 %106, %v76
    %v108 = vpop.permute.xlu0 %107
    %109 = vset.pattern.permute.xlu0 0
    %110 = vperm.xlu0 %109, %v77
    %v111 = vpop.permute.xlu0 %110
    %112 = vset.pattern.permute.xlu0 0
    %113 = vperm.xlu0 %112, %v78
    %v114 = vpop.permute.xlu0 %113
    %115 = vset.pattern.permute.xlu0 0
    %116 = vperm.xlu0 %115, %v79
    %v117 = vpop.permute.xlu0 %116
    %118 = vset.pattern.permute.xlu0 0
    %119 = vperm.xlu0 %118, %v80
    %v120 = vpop.permute.xlu0 %119
    %121 = vset.pattern.permute.xlu0 0
    %122 = vperm.xlu0 %121, %v81
    %v123 = vpop.permute.xlu0 %122
    %124 = vset.pattern.permute.xlu0 0
    %125 = vperm.xlu0 %124, %v82
    %v126 = vpop.permute.xlu0 %125
    %127 = vset.pattern.permute.xlu0 0
    %128 = vperm.xlu0 %127, %v83
    %v129 = vpop.permute.xlu0 %128
    %130 = vset.pattern.permute.xlu0 0
    %131 = vperm.xlu0 %130, %v84
    %v132 = vpop.permute.xlu0 %131
    %133 = vset.pattern.permute.xlu0 0
    %134 = vperm.xlu0 %133, %v85
    %v135 = vpop.permute.xlu0 %134
    %vm136 = vcmp.eq.s32.totalorder %v87, %v90
    %vm137 = vcmp.eq.s32.totalorder %v87, %v93
    %vm138 = vcmp.eq.s32.totalorder %v87, %v96
    %vm139 = vcmp.eq.s32.totalorder %v87, %v99
    %vm140 = vcmp.eq.s32.totalorder %v87, %v102
    %vm141 = vcmp.eq.s32.totalorder %v87, %v105
    %vm142 = vcmp.eq.s32.totalorder %v87, %v108
    %vm143 = vcmp.eq.s32.totalorder %v87, %v111
    %vm144 = vcmp.eq.s32.totalorder %v87, %v114
    %vm145 = vcmp.eq.s32.totalorder %v87, %v117
    %vm146 = vcmp.eq.s32.totalorder %v87, %v120
    %vm147 = vcmp.eq.s32.totalorder %v87, %v123
    %vm148 = vcmp.eq.s32.totalorder %v87, %v126
    %vm149 = vcmp.eq.s32.totalorder %v87, %v129
    %vm150 = vcmp.eq.s32.totalorder %v87, %v132
    %vm151 = vcmp.eq.s32.totalorder %v87, %v135
    %v152 = vsel %vm136, 1, 0
    %v153 = vsel %vm137, 1, 0
    %v154 = vsel %vm138, 1, 0
    %v155 = vsel %vm139, 1, 0
    %v156 = vsel %vm140, 1, 0
    %v157 = vsel %vm141, 1, 0
    %v158 = vsel %vm142, 1, 0
    %v159 = vsel %vm143, 1, 0
    %v160 = vsel %vm144, 1, 0
    %v161 = vsel %vm145, 1, 0
    %v162 = vsel %vm146, 1, 0
    %v163 = vsel %vm147, 1, 0
    %v164 = vsel %vm148, 1, 0
    %v165 = vsel %vm149, 1, 0
    %v166 = vsel %vm150, 1, 0
    %v167 = vsel %vm151, 1, 0
    %v168 = vcvt.s32.f32 %v152
    %v169 = vcvt.s32.f32 %v153
    %v170 = vcvt.s32.f32 %v154
    %v171 = vcvt.s32.f32 %v155
    %v172 = vcvt.s32.f32 %v156
    %v173 = vcvt.s32.f32 %v157
    %v174 = vcvt.s32.f32 %v158
    %v175 = vcvt.s32.f32 %v159
    %v176 = vcvt.s32.f32 %v160
    %v177 = vcvt.s32.f32 %v161
    %v178 = vcvt.s32.f32 %v162
    %v179 = vcvt.s32.f32 %v163
    %v180 = vcvt.s32.f32 %v164
    %v181 = vcvt.s32.f32 %v165
    %v182 = vcvt.s32.f32 %v166
    %v183 = vcvt.s32.f32 %v167
    %vm184 = vcmask 130048
    %v185 = vsel %vm184, %v22, -inf
    %186 = vmax.xlane.f32.xlu0 %v185
    %v187 = vpop.xlane.xlu0 %186
    %v188 = vsel %vm184, %v23, -inf
    %189 = vmax.xlane.f32.xlu0 %v188
    %v190 = vpop.xlane.xlu0 %189
    %v191 = vsel %vm184, %v24, -inf
    %192 = vmax.xlane.f32.xlu0 %v191
    %v193 = vpop.xlane.xlu0 %192
    %v194 = vsel %vm184, %v25, -inf
    %195 = vmax.xlane.f32.xlu0 %v194
    %v196 = vpop.xlane.xlu0 %195
    %v197 = vsel %vm184, %v26, -inf
    %198 = vmax.xlane.f32.xlu0 %v197
    %v199 = vpop.xlane.xlu0 %198
    %v200 = vsel %vm184, %v27, -inf
    %201 = vmax.xlane.f32.xlu0 %v200
    %v202 = vpop.xlane.xlu0 %201
    %v203 = vsel %vm184, %v28, -inf
    %204 = vmax.xlane.f32.xlu0 %v203
    %v205 = vpop.xlane.xlu0 %204
    %v206 = vsel %vm184, %v29, -inf
    %207 = vmax.xlane.f32.xlu0 %v206
    %v208 = vpop.xlane.xlu0 %207
    %v209 = vsel %vm184, %v30, -inf
    %210 = vmax.xlane.f32.xlu0 %v209
    %v211 = vpop.xlane.xlu0 %210
    %v212 = vsel %vm184, %v31, -inf
    %213 = vmax.xlane.f32.xlu0 %v212
    %v214 = vpop.xlane.xlu0 %213
    %v215 = vsel %vm184, %v32, -inf
    %216 = vmax.xlane.f32.xlu0 %v215
    %v217 = vpop.xlane.xlu0 %216
    %v218 = vsel %vm184, %v33, -inf
    %219 = vmax.xlane.f32.xlu0 %v218
    %v220 = vpop.xlane.xlu0 %219
    %v221 = vsel %vm184, %v34, -inf
    %222 = vmax.xlane.f32.xlu0 %v221
    %v223 = vpop.xlane.xlu0 %222
    %v224 = vsel %vm184, %v35, -inf
    %225 = vmax.xlane.f32.xlu0 %v224
    %v226 = vpop.xlane.xlu0 %225
    %v227 = vsel %vm184, %v36, -inf
    %228 = vmax.xlane.f32.xlu0 %v227
    %v229 = vpop.xlane.xlu0 %228
    %v230 = vsel %vm184, %v37, -inf
    %231 = vmax.xlane.f32.xlu0 %v230
    %v232 = vpop.xlane.xlu0 %231
    %v233 = vsub.f32 %v22, %v187
    %v234 = vsub.f32 %v23, %v190
    %v235 = vsub.f32 %v24, %v193
    %v236 = vsub.f32 %v25, %v196
    %v237 = vsub.f32 %v26, %v199
    %v238 = vsub.f32 %v27, %v202
    %v239 = vsub.f32 %v28, %v205
    %v240 = vsub.f32 %v29, %v208
    %v241 = vsub.f32 %v30, %v211
    %v242 = vsub.f32 %v31, %v214
    %v243 = vsub.f32 %v32, %v217
    %v244 = vsub.f32 %v33, %v220
    %v245 = vsub.f32 %v34, %v223
    %v246 = vsub.f32 %v35, %v226
    %v247 = vsub.f32 %v36, %v229
    %v248 = vsub.f32 %v37, %v232
    %v249 = vmul.f32 %v233, 1.442695
    %v250 = vpow.pop %v249
    %v251 = vmul.f32 %v234, 1.442695
    %v252 = vpow.pop %v251
    %v253 = vmul.f32 %v235, 1.442695
    %v254 = vpow.pop %v253
    %v255 = vmul.f32 %v236, 1.442695
    %v256 = vpow.pop %v255
    %v257 = vmul.f32 %v237, 1.442695
    %v258 = vpow.pop %v257
    %v259 = vmul.f32 %v238, 1.442695
    %v260 = vpow.pop %v259
    %v261 = vmul.f32 %v239, 1.442695
    %v262 = vpow.pop %v261
    %v263 = vmul.f32 %v240, 1.442695
    %v264 = vpow.pop %v263
    %v265 = vmul.f32 %v241, 1.442695
    %v266 = vpow.pop %v265
    %v267 = vmul.f32 %v242, 1.442695
    %v268 = vpow.pop %v267
    %v269 = vmul.f32 %v243, 1.442695
    %v270 = vpow.pop %v269
    %v271 = vmul.f32 %v244, 1.442695
    %v272 = vpow.pop %v271
    %v273 = vmul.f32 %v245, 1.442695
    %v274 = vpow.pop %v273
    %v275 = vmul.f32 %v246, 1.442695
    %v276 = vpow.pop %v275
    %v277 = vmul.f32 %v247, 1.442695
    %v278 = vpow.pop %v277
    %v279 = vmul.f32 %v248, 1.442695
    %v280 = vpow.pop %v279
    %v281 = vsel %vm184, %v250, 0.0
    %282 = vadd.xlane.f32.xlu0 %v281
    %v283 = vpop.xlane.xlu0 %282
    %v284 = vsel %vm184, %v252, 0.0
    %285 = vadd.xlane.f32.xlu0 %v284
    %v286 = vpop.xlane.xlu0 %285
    %v287 = vsel %vm184, %v254, 0.0
    %288 = vadd.xlane.f32.xlu0 %v287
    %v289 = vpop.xlane.xlu0 %288
    %v290 = vsel %vm184, %v256, 0.0
    %291 = vadd.xlane.f32.xlu0 %v290
    %v292 = vpop.xlane.xlu0 %291
    %v293 = vsel %vm184, %v258, 0.0
    %294 = vadd.xlane.f32.xlu0 %v293
    %v295 = vpop.xlane.xlu0 %294
    %v296 = vsel %vm184, %v260, 0.0
    %297 = vadd.xlane.f32.xlu0 %v296
    %v298 = vpop.xlane.xlu0 %297
    %v299 = vsel %vm184, %v262, 0.0
    %300 = vadd.xlane.f32.xlu0 %v299
    %v301 = vpop.xlane.xlu0 %300
    %v302 = vsel %vm184, %v264, 0.0
    %303 = vadd.xlane.f32.xlu0 %v302
    %v304 = vpop.xlane.xlu0 %303
    %v305 = vsel %vm184, %v266, 0.0
    %306 = vadd.xlane.f32.xlu0 %v305
    %v307 = vpop.xlane.xlu0 %306
    %v308 = vsel %vm184, %v268, 0.0
    %309 = vadd.xlane.f32.xlu0 %v308
    %v310 = vpop.xlane.xlu0 %309
    %v311 = vsel %vm184, %v270, 0.0
    %312 = vadd.xlane.f32.xlu0 %v311
    %v313 = vpop.xlane.xlu0 %312
    %v314 = vsel %vm184, %v272, 0.0
    %315 = vadd.xlane.f32.xlu0 %v314
    %v316 = vpop.xlane.xlu0 %315
    %v317 = vsel %vm184, %v274, 0.0
    %318 = vadd.xlane.f32.xlu0 %v317
    %v319 = vpop.xlane.xlu0 %318
    %v320 = vsel %vm184, %v276, 0.0
    %321 = vadd.xlane.f32.xlu0 %v320
    %v322 = vpop.xlane.xlu0 %321
    %v323 = vsel %vm184, %v278, 0.0
    %324 = vadd.xlane.f32.xlu0 %v323
    %v325 = vpop.xlane.xlu0 %324
    %v326 = vsel %vm184, %v280, 0.0
    %327 = vadd.xlane.f32.xlu0 %v326
    %v328 = vpop.xlane.xlu0 %327
    %v329 = vlog2.pop %v283
    %v330 = vmul.f32 %v329, 0.6931472
    %v331 = vlog2.pop %v286
    %v332 = vmul.f32 %v331, 0.6931472
    %v333 = vlog2.pop %v289
    %v334 = vmul.f32 %v333, 0.6931472
    %v335 = vlog2.pop %v292
    %v336 = vmul.f32 %v335, 0.6931472
    %v337 = vlog2.pop %v295
    %v338 = vmul.f32 %v337, 0.6931472
    %v339 = vlog2.pop %v298
    %v340 = vmul.f32 %v339, 0.6931472
    %v341 = vlog2.pop %v301
    %v342 = vmul.f32 %v341, 0.6931472
    %v343 = vlog2.pop %v304
    %v344 = vmul.f32 %v343, 0.6931472
    %v345 = vlog2.pop %v307
    %v346 = vmul.f32 %v345, 0.6931472
    %v347 = vlog2.pop %v310
    %v348 = vmul.f32 %v347, 0.6931472
    %v349 = vlog2.pop %v313
    %v350 = vmul.f32 %v349, 0.6931472
    %v351 = vlog2.pop %v316
    %v352 = vmul.f32 %v351, 0.6931472
    %v353 = vlog2.pop %v319
    %v354 = vmul.f32 %v353, 0.6931472
    %v355 = vlog2.pop %v322
    %v356 = vmul.f32 %v355, 0.6931472
    %v357 = vlog2.pop %v325
    %v358 = vmul.f32 %v357, 0.6931472
    %v359 = vlog2.pop %v328
    %v360 = vmul.f32 %v359, 0.6931472
    %v361 = vsub.f32 %v233, %v330
    %v362 = vsub.f32 %v234, %v332
    %v363 = vsub.f32 %v235, %v334
    %v364 = vsub.f32 %v236, %v336
    %v365 = vsub.f32 %v237, %v338
    %v366 = vsub.f32 %v238, %v340
    %v367 = vsub.f32 %v239, %v342
    %v368 = vsub.f32 %v240, %v344
    %v369 = vsub.f32 %v241, %v346
    %v370 = vsub.f32 %v242, %v348
    %v371 = vsub.f32 %v243, %v350
    %v372 = vsub.f32 %v244, %v352
    %v373 = vsub.f32 %v245, %v354
    %v374 = vsub.f32 %v246, %v356
    %v375 = vsub.f32 %v247, %v358
    %v376 = vsub.f32 %v248, %v360
    %v377 = vsel %vm184, %v54, -inf
    %378 = vmax.xlane.f32.xlu0 %v377
    %v379 = vpop.xlane.xlu0 %378
    %v380 = vsel %vm184, %v55, -inf
    %381 = vmax.xlane.f32.xlu0 %v380
    %v382 = vpop.xlane.xlu0 %381
    %v383 = vsel %vm184, %v56, -inf
    %384 = vmax.xlane.f32.xlu0 %v383
    %v385 = vpop.xlane.xlu0 %384
    %v386 = vsel %vm184, %v57, -inf
    %387 = vmax.xlane.f32.xlu0 %v386
    %v388 = vpop.xlane.xlu0 %387
    %v389 = vsel %vm184, %v58, -inf
    %390 = vmax.xlane.f32.xlu0 %v389
    %v391 = vpop.xlane.xlu0 %390
    %v392 = vsel %vm184, %v59, -inf
    %393 = vmax.xlane.f32.xlu0 %v392
    %v394 = vpop.xlane.xlu0 %393
    %v395 = vsel %vm184, %v60, -inf
    %396 = vmax.xlane.f32.xlu0 %v395
    %v397 = vpop.xlane.xlu0 %396
    %v398 = vsel %vm184, %v61, -inf
    %399 = vmax.xlane.f32.xlu0 %v398
    %v400 = vpop.xlane.xlu0 %399
    %v401 = vsel %vm184, %v62, -inf
    %402 = vmax.xlane.f32.xlu0 %v401
    %v403 = vpop.xlane.xlu0 %402
    %v404 = vsel %vm184, %v63, -inf
    %405 = vmax.xlane.f32.xlu0 %v404
    %v406 = vpop.xlane.xlu0 %405
    %v407 = vsel %vm184, %v64, -inf
    %408 = vmax.xlane.f32.xlu0 %v407
    %v409 = vpop.xlane.xlu0 %408
    %v410 = vsel %vm184, %v65, -inf
    %411 = vmax.xlane.f32.xlu0 %v410
    %v412 = vpop.xlane.xlu0 %411
    %v413 = vsel %vm184, %v66, -inf
    %414 = vmax.xlane.f32.xlu0 %v413
    %v415 = vpop.xlane.xlu0 %414
    %v416 = vsel %vm184, %v67, -inf
    %417 = vmax.xlane.f32.xlu0 %v416
    %v418 = vpop.xlane.xlu0 %417
    %v419 = vsel %vm184, %v68, -inf
    %420 = vmax.xlane.f32.xlu0 %v419
    %v421 = vpop.xlane.xlu0 %420
    %v422 = vsel %vm184, %v69, -inf
    %423 = vmax.xlane.f32.xlu0 %v422
    %v424 = vpop.xlane.xlu0 %423
    %v425 = vsub.f32 %v54, %v379
    %v426 = vsub.f32 %v55, %v382
    %v427 = vsub.f32 %v56, %v385
    %v428 = vsub.f32 %v57, %v388
    %v429 = vsub.f32 %v58, %v391
    %v430 = vsub.f32 %v59, %v394
    %v431 = vsub.f32 %v60, %v397
    %v432 = vsub.f32 %v61, %v400
    %v433 = vsub.f32 %v62, %v403
    %v434 = vsub.f32 %v63, %v406
    %v435 = vsub.f32 %v64, %v409
    %v436 = vsub.f32 %v65, %v412
    %v437 = vsub.f32 %v66, %v415
    %v438 = vsub.f32 %v67, %v418
    %v439 = vsub.f32 %v68, %v421
    %v440 = vsub.f32 %v69, %v424
    %v441 = vmul.f32 %v425, 1.442695
    %v442 = vpow.pop %v441
    %v443 = vmul.f32 %v426, 1.442695
    %v444 = vpow.pop %v443
    %v445 = vmul.f32 %v427, 1.442695
    %v446 = vpow.pop %v445
    %v447 = vmul.f32 %v428, 1.442695
    %v448 = vpow.pop %v447
    %v449 = vmul.f32 %v429, 1.442695
    %v450 = vpow.pop %v449
    %v451 = vmul.f32 %v430, 1.442695
    %v452 = vpow.pop %v451
    %v453 = vmul.f32 %v431, 1.442695
    %v454 = vpow.pop %v453
    %v455 = vmul.f32 %v432, 1.442695
    %v456 = vpow.pop %v455
    %v457 = vmul.f32 %v433, 1.442695
    %v458 = vpow.pop %v457
    %v459 = vmul.f32 %v434, 1.442695
    %v460 = vpow.pop %v459
    %v461 = vmul.f32 %v435, 1.442695
    %v462 = vpow.pop %v461
    %v463 = vmul.f32 %v436, 1.442695
    %v464 = vpow.pop %v463
    %v465 = vmul.f32 %v437, 1.442695
    %v466 = vpow.pop %v465
    %v467 = vmul.f32 %v438, 1.442695
    %v468 = vpow.pop %v467
    %v469 = vmul.f32 %v439, 1.442695
    %v470 = vpow.pop %v469
    %v471 = vmul.f32 %v440, 1.442695
    %v472 = vpow.pop %v471
    %v473 = vsel %vm184, %v442, 0.0
    %474 = vadd.xlane.f32.xlu0 %v473
    %v475 = vpop.xlane.xlu0 %474
    %v476 = vsel %vm184, %v444, 0.0
    %477 = vadd.xlane.f32.xlu0 %v476
    %v478 = vpop.xlane.xlu0 %477
    %v479 = vsel %vm184, %v446, 0.0
    %480 = vadd.xlane.f32.xlu0 %v479
    %v481 = vpop.xlane.xlu0 %480
    %v482 = vsel %vm184, %v448, 0.0
    %483 = vadd.xlane.f32.xlu0 %v482
    %v484 = vpop.xlane.xlu0 %483
    %v485 = vsel %vm184, %v450, 0.0
    %486 = vadd.xlane.f32.xlu0 %v485
    %v487 = vpop.xlane.xlu0 %486
    %v488 = vsel %vm184, %v452, 0.0
    %489 = vadd.xlane.f32.xlu0 %v488
    %v490 = vpop.xlane.xlu0 %489
    %v491 = vsel %vm184, %v454, 0.0
    %492 = vadd.xlane.f32.xlu0 %v491
    %v493 = vpop.xlane.xlu0 %492
    %v494 = vsel %vm184, %v456, 0.0
    %495 = vadd.xlane.f32.xlu0 %v494
    %v496 = vpop.xlane.xlu0 %495
    %v497 = vsel %vm184, %v458, 0.0
    %498 = vadd.xlane.f32.xlu0 %v497
    %v499 = vpop.xlane.xlu0 %498
    %v500 = vsel %vm184, %v460, 0.0
    %501 = vadd.xlane.f32.xlu0 %v500
    %v502 = vpop.xlane.xlu0 %501
    %v503 = vsel %vm184, %v462, 0.0
    %504 = vadd.xlane.f32.xlu0 %v503
    %v505 = vpop.xlane.xlu0 %504
    %v506 = vsel %vm184, %v464, 0.0
    %507 = vadd.xlane.f32.xlu0 %v506
    %v508 = vpop.xlane.xlu0 %507
    %v509 = vsel %vm184, %v466, 0.0
    %510 = vadd.xlane.f32.xlu0 %v509
    %v511 = vpop.xlane.xlu0 %510
    %v512 = vsel %vm184, %v468, 0.0
    %513 = vadd.xlane.f32.xlu0 %v512
    %v514 = vpop.xlane.xlu0 %513
    %v515 = vsel %vm184, %v470, 0.0
    %516 = vadd.xlane.f32.xlu0 %v515
    %v517 = vpop.xlane.xlu0 %516
    %v518 = vsel %vm184, %v472, 0.0
    %519 = vadd.xlane.f32.xlu0 %v518
    %v520 = vpop.xlane.xlu0 %519
    %v521 = vlog2.pop %v475
    %v522 = vmul.f32 %v521, 0.6931472
    %v523 = vlog2.pop %v478
    %v524 = vmul.f32 %v523, 0.6931472
    %v525 = vlog2.pop %v481
    %v526 = vmul.f32 %v525, 0.6931472
    %v527 = vlog2.pop %v484
    %v528 = vmul.f32 %v527, 0.6931472
    %v529 = vlog2.pop %v487
    %v530 = vmul.f32 %v529, 0.6931472
    %v531 = vlog2.pop %v490
    %v532 = vmul.f32 %v531, 0.6931472
    %v533 = vlog2.pop %v493
    %v534 = vmul.f32 %v533, 0.6931472
    %v535 = vlog2.pop %v496
    %v536 = vmul.f32 %v535, 0.6931472
    %v537 = vlog2.pop %v499
    %v538 = vmul.f32 %v537, 0.6931472
    %v539 = vlog2.pop %v502
    %v540 = vmul.f32 %v539, 0.6931472
    %v541 = vlog2.pop %v505
    %v542 = vmul.f32 %v541, 0.6931472
    %v543 = vlog2.pop %v508
    %v544 = vmul.f32 %v543, 0.6931472
    %v545 = vlog2.pop %v511
    %v546 = vmul.f32 %v545, 0.6931472
    %v547 = vlog2.pop %v514
    %v548 = vmul.f32 %v547, 0.6931472
    %v549 = vlog2.pop %v517
    %v550 = vmul.f32 %v549, 0.6931472
    %v551 = vlog2.pop %v520
    %v552 = vmul.f32 %v551, 0.6931472
    %v553 = vsub.f32 %v425, %v522
    %v554 = vsub.f32 %v426, %v524
    %v555 = vsub.f32 %v427, %v526
    %v556 = vsub.f32 %v428, %v528
    %v557 = vsub.f32 %v429, %v530
    %v558 = vsub.f32 %v430, %v532
    %v559 = vsub.f32 %v431, %v534
    %v560 = vsub.f32 %v432, %v536
    %v561 = vsub.f32 %v433, %v538
    %v562 = vsub.f32 %v434, %v540
    %v563 = vsub.f32 %v435, %v542
    %v564 = vsub.f32 %v436, %v544
    %v565 = vsub.f32 %v437, %v546
    %v566 = vsub.f32 %v438, %v548
    %v567 = vsub.f32 %v439, %v550
    %v568 = vsub.f32 %v440, %v552
    %v569 = vmul.f32 %v22, 0.25
    %v570 = vmul.f32 %v23, 0.25
    %v571 = vmul.f32 %v24, 0.25
    %v572 = vmul.f32 %v25, 0.25
    %v573 = vmul.f32 %v26, 0.25
    %v574 = vmul.f32 %v27, 0.25
    %v575 = vmul.f32 %v28, 0.25
    %v576 = vmul.f32 %v29, 0.25
    %v577 = vmul.f32 %v30, 0.25
    %v578 = vmul.f32 %v31, 0.25
    %v579 = vmul.f32 %v32, 0.25
    %v580 = vmul.f32 %v33, 0.25
    %v581 = vmul.f32 %v34, 0.25
    %v582 = vmul.f32 %v35, 0.25
    %v583 = vmul.f32 %v36, 0.25
    %v584 = vmul.f32 %v37, 0.25
    %v585 = vsel %vm184, %v569, -inf
    %586 = vmax.xlane.f32.xlu0 %v585
    %v587 = vpop.xlane.xlu0 %586
    %v588 = vsel %vm184, %v570, -inf
    %589 = vmax.xlane.f32.xlu0 %v588
    %v590 = vpop.xlane.xlu0 %589
    %v591 = vsel %vm184, %v571, -inf
    %592 = vmax.xlane.f32.xlu0 %v591
    %v593 = vpop.xlane.xlu0 %592
    %v594 = vsel %vm184, %v572, -inf
    %595 = vmax.xlane.f32.xlu0 %v594
    %v596 = vpop.xlane.xlu0 %595
    %v597 = vsel %vm184, %v573, -inf
    %598 = vmax.xlane.f32.xlu0 %v597
    %v599 = vpop.xlane.xlu0 %598
    %v600 = vsel %vm184, %v574, -inf
    %601 = vmax.xlane.f32.xlu0 %v600
    %v602 = vpop.xlane.xlu0 %601
    %v603 = vsel %vm184, %v575, -inf
    %604 = vmax.xlane.f32.xlu0 %v603
    %v605 = vpop.xlane.xlu0 %604
    %v606 = vsel %vm184, %v576, -inf
    %607 = vmax.xlane.f32.xlu0 %v606
    %v608 = vpop.xlane.xlu0 %607
    %v609 = vsel %vm184, %v577, -inf
    %610 = vmax.xlane.f32.xlu0 %v609
    %v611 = vpop.xlane.xlu0 %610
    %v612 = vsel %vm184, %v578, -inf
    %613 = vmax.xlane.f32.xlu0 %v612
    %v614 = vpop.xlane.xlu0 %613
    %v615 = vsel %vm184, %v579, -inf
    %616 = vmax.xlane.f32.xlu0 %v615
    %v617 = vpop.xlane.xlu0 %616
    %v618 = vsel %vm184, %v580, -inf
    %619 = vmax.xlane.f32.xlu0 %v618
    %v620 = vpop.xlane.xlu0 %619
    %v621 = vsel %vm184, %v581, -inf
    %622 = vmax.xlane.f32.xlu0 %v621
    %v623 = vpop.xlane.xlu0 %622
    %v624 = vsel %vm184, %v582, -inf
    %625 = vmax.xlane.f32.xlu0 %v624
    %v626 = vpop.xlane.xlu0 %625
    %v627 = vsel %vm184, %v583, -inf
    %628 = vmax.xlane.f32.xlu0 %v627
    %v629 = vpop.xlane.xlu0 %628
    %v630 = vsel %vm184, %v584, -inf
    %631 = vmax.xlane.f32.xlu0 %v630
    %v632 = vpop.xlane.xlu0 %631
    %v633 = vsub.f32 %v569, %v587
    %v634 = vsub.f32 %v570, %v590
    %v635 = vsub.f32 %v571, %v593
    %v636 = vsub.f32 %v572, %v596
    %v637 = vsub.f32 %v573, %v599
    %v638 = vsub.f32 %v574, %v602
    %v639 = vsub.f32 %v575, %v605
    %v640 = vsub.f32 %v576, %v608
    %v641 = vsub.f32 %v577, %v611
    %v642 = vsub.f32 %v578, %v614
    %v643 = vsub.f32 %v579, %v617
    %v644 = vsub.f32 %v580, %v620
    %v645 = vsub.f32 %v581, %v623
    %v646 = vsub.f32 %v582, %v626
    %v647 = vsub.f32 %v583, %v629
    %v648 = vsub.f32 %v584, %v632
    %v649 = vmul.f32 %v633, 1.442695
    %v650 = vpow.pop %v649
    %v651 = vmul.f32 %v634, 1.442695
    %v652 = vpow.pop %v651
    %v653 = vmul.f32 %v635, 1.442695
    %v654 = vpow.pop %v653
    %v655 = vmul.f32 %v636, 1.442695
    %v656 = vpow.pop %v655
    %v657 = vmul.f32 %v637, 1.442695
    %v658 = vpow.pop %v657
    %v659 = vmul.f32 %v638, 1.442695
    %v660 = vpow.pop %v659
    %v661 = vmul.f32 %v639, 1.442695
    %v662 = vpow.pop %v661
    %v663 = vmul.f32 %v640, 1.442695
    %v664 = vpow.pop %v663
    %v665 = vmul.f32 %v641, 1.442695
    %v666 = vpow.pop %v665
    %v667 = vmul.f32 %v642, 1.442695
    %v668 = vpow.pop %v667
    %v669 = vmul.f32 %v643, 1.442695
    %v670 = vpow.pop %v669
    %v671 = vmul.f32 %v644, 1.442695
    %v672 = vpow.pop %v671
    %v673 = vmul.f32 %v645, 1.442695
    %v674 = vpow.pop %v673
    %v675 = vmul.f32 %v646, 1.442695
    %v676 = vpow.pop %v675
    %v677 = vmul.f32 %v647, 1.442695
    %v678 = vpow.pop %v677
    %v679 = vmul.f32 %v648, 1.442695
    %v680 = vpow.pop %v679
    %v681 = vsel %vm184, %v650, 0.0
    %682 = vadd.xlane.f32.xlu0 %v681
    %v683 = vpop.xlane.xlu0 %682
    %v684 = vsel %vm184, %v652, 0.0
    %685 = vadd.xlane.f32.xlu0 %v684
    %v686 = vpop.xlane.xlu0 %685
    %v687 = vsel %vm184, %v654, 0.0
    %688 = vadd.xlane.f32.xlu0 %v687
    %v689 = vpop.xlane.xlu0 %688
    %v690 = vsel %vm184, %v656, 0.0
    %691 = vadd.xlane.f32.xlu0 %v690
    %v692 = vpop.xlane.xlu0 %691
    %v693 = vsel %vm184, %v658, 0.0
    %694 = vadd.xlane.f32.xlu0 %v693
    %v695 = vpop.xlane.xlu0 %694
    %v696 = vsel %vm184, %v660, 0.0
    %697 = vadd.xlane.f32.xlu0 %v696
    %v698 = vpop.xlane.xlu0 %697
    %v699 = vsel %vm184, %v662, 0.0
    %700 = vadd.xlane.f32.xlu0 %v699
    %v701 = vpop.xlane.xlu0 %700
    %v702 = vsel %vm184, %v664, 0.0
    %703 = vadd.xlane.f32.xlu0 %v702
    %v704 = vpop.xlane.xlu0 %703
    %v705 = vsel %vm184, %v666, 0.0
    %706 = vadd.xlane.f32.xlu0 %v705
    %v707 = vpop.xlane.xlu0 %706
    %v708 = vsel %vm184, %v668, 0.0
    %709 = vadd.xlane.f32.xlu0 %v708
    %v710 = vpop.xlane.xlu0 %709
    %v711 = vsel %vm184, %v670, 0.0
    %712 = vadd.xlane.f32.xlu0 %v711
    %v713 = vpop.xlane.xlu0 %712
    %v714 = vsel %vm184, %v672, 0.0
    %715 = vadd.xlane.f32.xlu0 %v714
    %v716 = vpop.xlane.xlu0 %715
    %v717 = vsel %vm184, %v674, 0.0
    %718 = vadd.xlane.f32.xlu0 %v717
    %v719 = vpop.xlane.xlu0 %718
    %v720 = vsel %vm184, %v676, 0.0
    %721 = vadd.xlane.f32.xlu0 %v720
    %v722 = vpop.xlane.xlu0 %721
    %v723 = vsel %vm184, %v678, 0.0
    %724 = vadd.xlane.f32.xlu0 %v723
    %v725 = vpop.xlane.xlu0 %724
    %v726 = vsel %vm184, %v680, 0.0
    %727 = vadd.xlane.f32.xlu0 %v726
    %v728 = vpop.xlane.xlu0 %727
    %v729 = vlog2.pop %v683
    %v730 = vmul.f32 %v729, 0.6931472
    %v731 = vlog2.pop %v686
    %v732 = vmul.f32 %v731, 0.6931472
    %v733 = vlog2.pop %v689
    %v734 = vmul.f32 %v733, 0.6931472
    %v735 = vlog2.pop %v692
    %v736 = vmul.f32 %v735, 0.6931472
    %v737 = vlog2.pop %v695
    %v738 = vmul.f32 %v737, 0.6931472
    %v739 = vlog2.pop %v698
    %v740 = vmul.f32 %v739, 0.6931472
    %v741 = vlog2.pop %v701
    %v742 = vmul.f32 %v741, 0.6931472
    %v743 = vlog2.pop %v704
    %v744 = vmul.f32 %v743, 0.6931472
    %v745 = vlog2.pop %v707
    %v746 = vmul.f32 %v745, 0.6931472
    %v747 = vlog2.pop %v710
    %v748 = vmul.f32 %v747, 0.6931472
    %v749 = vlog2.pop %v713
    %v750 = vmul.f32 %v749, 0.6931472
    %v751 = vlog2.pop %v716
    %v752 = vmul.f32 %v751, 0.6931472
    %v753 = vlog2.pop %v719
    %v754 = vmul.f32 %v753, 0.6931472
    %v755 = vlog2.pop %v722
    %v756 = vmul.f32 %v755, 0.6931472
    %v757 = vlog2.pop %v725
    %v758 = vmul.f32 %v757, 0.6931472
    %v759 = vlog2.pop %v728
    %v760 = vmul.f32 %v759, 0.6931472
    %v761 = vsub.f32 %v633, %v730
    %v762 = vsub.f32 %v634, %v732
    %v763 = vsub.f32 %v635, %v734
    %v764 = vsub.f32 %v636, %v736
    %v765 = vsub.f32 %v637, %v738
    %v766 = vsub.f32 %v638, %v740
    %v767 = vsub.f32 %v639, %v742
    %v768 = vsub.f32 %v640, %v744
    %v769 = vsub.f32 %v641, %v746
    %v770 = vsub.f32 %v642, %v748
    %v771 = vsub.f32 %v643, %v750
    %v772 = vsub.f32 %v644, %v752
    %v773 = vsub.f32 %v645, %v754
    %v774 = vsub.f32 %v646, %v756
    %v775 = vsub.f32 %v647, %v758
    %v776 = vsub.f32 %v648, %v760
    %v777 = vrcp.pop %v683
    %v778 = vmul.f32 1.0, %v777
    %v779 = vrcp.pop %v686
    %v780 = vmul.f32 1.0, %v779
    %v781 = vrcp.pop %v689
    %v782 = vmul.f32 1.0, %v781
    %v783 = vrcp.pop %v692
    %v784 = vmul.f32 1.0, %v783
    %v785 = vrcp.pop %v695
    %v786 = vmul.f32 1.0, %v785
    %v787 = vrcp.pop %v698
    %v788 = vmul.f32 1.0, %v787
    %v789 = vrcp.pop %v701
    %v790 = vmul.f32 1.0, %v789
    %v791 = vrcp.pop %v704
    %v792 = vmul.f32 1.0, %v791
    %v793 = vrcp.pop %v707
    %v794 = vmul.f32 1.0, %v793
    %v795 = vrcp.pop %v710
    %v796 = vmul.f32 1.0, %v795
    %v797 = vrcp.pop %v713
    %v798 = vmul.f32 1.0, %v797
    %v799 = vrcp.pop %v716
    %v800 = vmul.f32 1.0, %v799
    %v801 = vrcp.pop %v719
    %v802 = vmul.f32 1.0, %v801
    %v803 = vrcp.pop %v722
    %v804 = vmul.f32 1.0, %v803
    %v805 = vrcp.pop %v725
    %v806 = vmul.f32 1.0, %v805
    %v807 = vrcp.pop %v728
    %v808 = vmul.f32 1.0, %v807
    %v809 = vmul.f32 %v650, %v778
    %v810 = vmul.f32 %v652, %v780
    %v811 = vmul.f32 %v654, %v782
    %v812 = vmul.f32 %v656, %v784
    %v813 = vmul.f32 %v658, %v786
    %v814 = vmul.f32 %v660, %v788
    %v815 = vmul.f32 %v662, %v790
    %v816 = vmul.f32 %v664, %v792
    %v817 = vmul.f32 %v666, %v794
    %v818 = vmul.f32 %v668, %v796
    %v819 = vmul.f32 %v670, %v798
    %v820 = vmul.f32 %v672, %v800
    %v821 = vmul.f32 %v674, %v802
    %v822 = vmul.f32 %v676, %v804
    %v823 = vmul.f32 %v678, %v806
    %v824 = vmul.f32 %v680, %v808
    %v825 = vmul.f32 %v38, 0.25
    %v826 = vmul.f32 %v39, 0.25
    %v827 = vmul.f32 %v40, 0.25
    %v828 = vmul.f32 %v41, 0.25
    %v829 = vmul.f32 %v42, 0.25
    %v830 = vmul.f32 %v43, 0.25
    %v831 = vmul.f32 %v44, 0.25
    %v832 = vmul.f32 %v45, 0.25
    %v833 = vmul.f32 %v46, 0.25
    %v834 = vmul.f32 %v47, 0.25
    %v835 = vmul.f32 %v48, 0.25
    %v836 = vmul.f32 %v49, 0.25
    %v837 = vmul.f32 %v50, 0.25
    %v838 = vmul.f32 %v51, 0.25
    %v839 = vmul.f32 %v52, 0.25
    %v840 = vmul.f32 %v53, 0.25
    %v841 = vsel %vm184, %v825, -inf
    %842 = vmax.xlane.f32.xlu0 %v841
    %v843 = vpop.xlane.xlu0 %842
    %v844 = vsel %vm184, %v826, -inf
    %845 = vmax.xlane.f32.xlu0 %v844
    %v846 = vpop.xlane.xlu0 %845
    %v847 = vsel %vm184, %v827, -inf
    %848 = vmax.xlane.f32.xlu0 %v847
    %v849 = vpop.xlane.xlu0 %848
    %v850 = vsel %vm184, %v828, -inf
    %851 = vmax.xlane.f32.xlu0 %v850
    %v852 = vpop.xlane.xlu0 %851
    %v853 = vsel %vm184, %v829, -inf
    %854 = vmax.xlane.f32.xlu0 %v853
    %v855 = vpop.xlane.xlu0 %854
    %v856 = vsel %vm184, %v830, -inf
    %857 = vmax.xlane.f32.xlu0 %v856
    %v858 = vpop.xlane.xlu0 %857
    %v859 = vsel %vm184, %v831, -inf
    %860 = vmax.xlane.f32.xlu0 %v859
    %v861 = vpop.xlane.xlu0 %860
    %v862 = vsel %vm184, %v832, -inf
    %863 = vmax.xlane.f32.xlu0 %v862
    %v864 = vpop.xlane.xlu0 %863
    %v865 = vsel %vm184, %v833, -inf
    %866 = vmax.xlane.f32.xlu0 %v865
    %v867 = vpop.xlane.xlu0 %866
    %v868 = vsel %vm184, %v834, -inf
    %869 = vmax.xlane.f32.xlu0 %v868
    %v870 = vpop.xlane.xlu0 %869
    %v871 = vsel %vm184, %v835, -inf
    %872 = vmax.xlane.f32.xlu0 %v871
    %v873 = vpop.xlane.xlu0 %872
    %v874 = vsel %vm184, %v836, -inf
    %875 = vmax.xlane.f32.xlu0 %v874
    %v876 = vpop.xlane.xlu0 %875
    %v877 = vsel %vm184, %v837, -inf
    %878 = vmax.xlane.f32.xlu0 %v877
    %v879 = vpop.xlane.xlu0 %878
    %v880 = vsel %vm184, %v838, -inf
    %881 = vmax.xlane.f32.xlu0 %v880
    %v882 = vpop.xlane.xlu0 %881
    %v883 = vsel %vm184, %v839, -inf
    %884 = vmax.xlane.f32.xlu0 %v883
    %v885 = vpop.xlane.xlu0 %884
    %v886 = vsel %vm184, %v840, -inf
    %887 = vmax.xlane.f32.xlu0 %v886
    %v888 = vpop.xlane.xlu0 %887
    %v889 = vsub.f32 %v825, %v843
    %v890 = vsub.f32 %v826, %v846
    %v891 = vsub.f32 %v827, %v849
    %v892 = vsub.f32 %v828, %v852
    %v893 = vsub.f32 %v829, %v855
    %v894 = vsub.f32 %v830, %v858
    %v895 = vsub.f32 %v831, %v861
    %v896 = vsub.f32 %v832, %v864
    %v897 = vsub.f32 %v833, %v867
    %v898 = vsub.f32 %v834, %v870
    %v899 = vsub.f32 %v835, %v873
    %v900 = vsub.f32 %v836, %v876
    %v901 = vsub.f32 %v837, %v879
    %v902 = vsub.f32 %v838, %v882
    %v903 = vsub.f32 %v839, %v885
    %v904 = vsub.f32 %v840, %v888
    %v905 = vmul.f32 %v889, 1.442695
    %v906 = vpow.pop %v905
    %v907 = vmul.f32 %v890, 1.442695
    %v908 = vpow.pop %v907
    %v909 = vmul.f32 %v891, 1.442695
    %v910 = vpow.pop %v909
    %v911 = vmul.f32 %v892, 1.442695
    %v912 = vpow.pop %v911
    %v913 = vmul.f32 %v893, 1.442695
    %v914 = vpow.pop %v913
    %v915 = vmul.f32 %v894, 1.442695
    %v916 = vpow.pop %v915
    %v917 = vmul.f32 %v895, 1.442695
    %v918 = vpow.pop %v917
    %v919 = vmul.f32 %v896, 1.442695
    %v920 = vpow.pop %v919
    %v921 = vmul.f32 %v897, 1.442695
    %v922 = vpow.pop %v921
    %v923 = vmul.f32 %v898, 1.442695
    %v924 = vpow.pop %v923
    %v925 = vmul.f32 %v899, 1.442695
    %v926 = vpow.pop %v925
    %v927 = vmul.f32 %v900, 1.442695
    %v928 = vpow.pop %v927
    %v929 = vmul.f32 %v901, 1.442695
    %v930 = vpow.pop %v929
    %v931 = vmul.f32 %v902, 1.442695
    %v932 = vpow.pop %v931
    %v933 = vmul.f32 %v903, 1.442695
    %v934 = vpow.pop %v933
    %v935 = vmul.f32 %v904, 1.442695
    %v936 = vpow.pop %v935
    %v937 = vsel %vm184, %v906, 0.0
    %938 = vadd.xlane.f32.xlu0 %v937
    %v939 = vpop.xlane.xlu0 %938
    %v940 = vsel %vm184, %v908, 0.0
    %941 = vadd.xlane.f32.xlu0 %v940
    %v942 = vpop.xlane.xlu0 %941
    %v943 = vsel %vm184, %v910, 0.0
    %944 = vadd.xlane.f32.xlu0 %v943
    %v945 = vpop.xlane.xlu0 %944
    %v946 = vsel %vm184, %v912, 0.0
    %947 = vadd.xlane.f32.xlu0 %v946
    %v948 = vpop.xlane.xlu0 %947
    %v949 = vsel %vm184, %v914, 0.0
    %950 = vadd.xlane.f32.xlu0 %v949
    %v951 = vpop.xlane.xlu0 %950
    %v952 = vsel %vm184, %v916, 0.0
    %953 = vadd.xlane.f32.xlu0 %v952
    %v954 = vpop.xlane.xlu0 %953
    %v955 = vsel %vm184, %v918, 0.0
    %956 = vadd.xlane.f32.xlu0 %v955
    %v957 = vpop.xlane.xlu0 %956
    %v958 = vsel %vm184, %v920, 0.0
    %959 = vadd.xlane.f32.xlu0 %v958
    %v960 = vpop.xlane.xlu0 %959
    %v961 = vsel %vm184, %v922, 0.0
    %962 = vadd.xlane.f32.xlu0 %v961
    %v963 = vpop.xlane.xlu0 %962
    %v964 = vsel %vm184, %v924, 0.0
    %965 = vadd.xlane.f32.xlu0 %v964
    %v966 = vpop.xlane.xlu0 %965
    %v967 = vsel %vm184, %v926, 0.0
    %968 = vadd.xlane.f32.xlu0 %v967
    %v969 = vpop.xlane.xlu0 %968
    %v970 = vsel %vm184, %v928, 0.0
    %971 = vadd.xlane.f32.xlu0 %v970
    %v972 = vpop.xlane.xlu0 %971
    %v973 = vsel %vm184, %v930, 0.0
    %974 = vadd.xlane.f32.xlu0 %v973
    %v975 = vpop.xlane.xlu0 %974
    %v976 = vsel %vm184, %v932, 0.0
    %977 = vadd.xlane.f32.xlu0 %v976
    %v978 = vpop.xlane.xlu0 %977
    %v979 = vsel %vm184, %v934, 0.0
    %980 = vadd.xlane.f32.xlu0 %v979
    %v981 = vpop.xlane.xlu0 %980
    %v982 = vsel %vm184, %v936, 0.0
    %983 = vadd.xlane.f32.xlu0 %v982
    %v984 = vpop.xlane.xlu0 %983
    %v985 = vlog2.pop %v939
    %v986 = vmul.f32 %v985, 0.6931472
    %v987 = vlog2.pop %v942
    %v988 = vmul.f32 %v987, 0.6931472
    %v989 = vlog2.pop %v945
    %v990 = vmul.f32 %v989, 0.6931472
    %v991 = vlog2.pop %v948
    %v992 = vmul.f32 %v991, 0.6931472
    %v993 = vlog2.pop %v951
    %v994 = vmul.f32 %v993, 0.6931472
    %v995 = vlog2.pop %v954
    %v996 = vmul.f32 %v995, 0.6931472
    %v997 = vlog2.pop %v957
    %v998 = vmul.f32 %v997, 0.6931472
    %v999 = vlog2.pop %v960
    %v1000 = vmul.f32 %v999, 0.6931472
    %v1001 = vlog2.pop %v963
    %v1002 = vmul.f32 %v1001, 0.6931472
    %v1003 = vlog2.pop %v966
    %v1004 = vmul.f32 %v1003, 0.6931472
    %v1005 = vlog2.pop %v969
    %v1006 = vmul.f32 %v1005, 0.6931472
    %v1007 = vlog2.pop %v972
    %v1008 = vmul.f32 %v1007, 0.6931472
    %v1009 = vlog2.pop %v975
    %v1010 = vmul.f32 %v1009, 0.6931472
    %v1011 = vlog2.pop %v978
    %v1012 = vmul.f32 %v1011, 0.6931472
    %v1013 = vlog2.pop %v981
    %v1014 = vmul.f32 %v1013, 0.6931472
    %v1015 = vlog2.pop %v984
    %v1016 = vmul.f32 %v1015, 0.6931472
    %v1017 = vsub.f32 %v889, %v986
    %v1018 = vsub.f32 %v890, %v988
    %v1019 = vsub.f32 %v891, %v990
    %v1020 = vsub.f32 %v892, %v992
    %v1021 = vsub.f32 %v893, %v994
    %v1022 = vsub.f32 %v894, %v996
    %v1023 = vsub.f32 %v895, %v998
    %v1024 = vsub.f32 %v896, %v1000
    %v1025 = vsub.f32 %v897, %v1002
    %v1026 = vsub.f32 %v898, %v1004
    %v1027 = vsub.f32 %v899, %v1006
    %v1028 = vsub.f32 %v900, %v1008
    %v1029 = vsub.f32 %v901, %v1010
    %v1030 = vsub.f32 %v902, %v1012
    %v1031 = vsub.f32 %v903, %v1014
    %v1032 = vsub.f32 %v904, %v1016
    %v1033 = vrcp.pop %v939
    %v1034 = vmul.f32 1.0, %v1033
    %v1035 = vrcp.pop %v942
    %v1036 = vmul.f32 1.0, %v1035
    %v1037 = vrcp.pop %v945
    %v1038 = vmul.f32 1.0, %v1037
    %v1039 = vrcp.pop %v948
    %v1040 = vmul.f32 1.0, %v1039
    %v1041 = vrcp.pop %v951
    %v1042 = vmul.f32 1.0, %v1041
    %v1043 = vrcp.pop %v954
    %v1044 = vmul.f32 1.0, %v1043
    %v1045 = vrcp.pop %v957
    %v1046 = vmul.f32 1.0, %v1045
    %v1047 = vrcp.pop %v960
    %v1048 = vmul.f32 1.0, %v1047
    %v1049 = vrcp.pop %v963
    %v1050 = vmul.f32 1.0, %v1049
    %v1051 = vrcp.pop %v966
    %v1052 = vmul.f32 1.0, %v1051
    %v1053 = vrcp.pop %v969
    %v1054 = vmul.f32 1.0, %v1053
    %v1055 = vrcp.pop %v972
    %v1056 = vmul.f32 1.0, %v1055
    %v1057 = vrcp.pop %v975
    %v1058 = vmul.f32 1.0, %v1057
    %v1059 = vrcp.pop %v978
    %v1060 = vmul.f32 1.0, %v1059
    %v1061 = vrcp.pop %v981
    %v1062 = vmul.f32 1.0, %v1061
    %v1063 = vrcp.pop %v984
    %v1064 = vmul.f32 1.0, %v1063
    %v1065 = vmul.f32 %v906, %v1034
    %v1066 = vmul.f32 %v908, %v1036
    %v1067 = vmul.f32 %v910, %v1038
    %v1068 = vmul.f32 %v912, %v1040
    %v1069 = vmul.f32 %v914, %v1042
    %v1070 = vmul.f32 %v916, %v1044
    %v1071 = vmul.f32 %v918, %v1046
    %v1072 = vmul.f32 %v920, %v1048
    %v1073 = vmul.f32 %v922, %v1050
    %v1074 = vmul.f32 %v924, %v1052
    %v1075 = vmul.f32 %v926, %v1054
    %v1076 = vmul.f32 %v928, %v1056
    %v1077 = vmul.f32 %v930, %v1058
    %v1078 = vmul.f32 %v932, %v1060
    %v1079 = vmul.f32 %v934, %v1062
    %v1080 = vmul.f32 %v936, %v1064
    %v1081 = vmul.f32 %v54, 0.25
    %v1082 = vmul.f32 %v55, 0.25
    %v1083 = vmul.f32 %v56, 0.25
    %v1084 = vmul.f32 %v57, 0.25
    %v1085 = vmul.f32 %v58, 0.25
    %v1086 = vmul.f32 %v59, 0.25
    %v1087 = vmul.f32 %v60, 0.25
    %v1088 = vmul.f32 %v61, 0.25
    %v1089 = vmul.f32 %v62, 0.25
    %v1090 = vmul.f32 %v63, 0.25
    %v1091 = vmul.f32 %v64, 0.25
    %v1092 = vmul.f32 %v65, 0.25
    %v1093 = vmul.f32 %v66, 0.25
    %v1094 = vmul.f32 %v67, 0.25
    %v1095 = vmul.f32 %v68, 0.25
    %v1096 = vmul.f32 %v69, 0.25
    %v1097 = vsel %vm184, %v1081, -inf
    %1098 = vmax.xlane.f32.xlu0 %v1097
    %v1099 = vpop.xlane.xlu0 %1098
    %v1100 = vsel %vm184, %v1082, -inf
    %1101 = vmax.xlane.f32.xlu0 %v1100
    %v1102 = vpop.xlane.xlu0 %1101
    %v1103 = vsel %vm184, %v1083, -inf
    %1104 = vmax.xlane.f32.xlu0 %v1103
    %v1105 = vpop.xlane.xlu0 %1104
    %v1106 = vsel %vm184, %v1084, -inf
    %1107 = vmax.xlane.f32.xlu0 %v1106
    %v1108 = vpop.xlane.xlu0 %1107
    %v1109 = vsel %vm184, %v1085, -inf
    %1110 = vmax.xlane.f32.xlu0 %v1109
    %v1111 = vpop.xlane.xlu0 %1110
    %v1112 = vsel %vm184, %v1086, -inf
    %1113 = vmax.xlane.f32.xlu0 %v1112
    %v1114 = vpop.xlane.xlu0 %1113
    %v1115 = vsel %vm184, %v1087, -inf
    %1116 = vmax.xlane.f32.xlu0 %v1115
    %v1117 = vpop.xlane.xlu0 %1116
    %v1118 = vsel %vm184, %v1088, -inf
    %1119 = vmax.xlane.f32.xlu0 %v1118
    %v1120 = vpop.xlane.xlu0 %1119
    %v1121 = vsel %vm184, %v1089, -inf
    %1122 = vmax.xlane.f32.xlu0 %v1121
    %v1123 = vpop.xlane.xlu0 %1122
    %v1124 = vsel %vm184, %v1090, -inf
    %1125 = vmax.xlane.f32.xlu0 %v1124
    %v1126 = vpop.xlane.xlu0 %1125
    %v1127 = vsel %vm184, %v1091, -inf
    %1128 = vmax.xlane.f32.xlu0 %v1127
    %v1129 = vpop.xlane.xlu0 %1128
    %v1130 = vsel %vm184, %v1092, -inf
    %1131 = vmax.xlane.f32.xlu0 %v1130
    %v1132 = vpop.xlane.xlu0 %1131
    %v1133 = vsel %vm184, %v1093, -inf
    %1134 = vmax.xlane.f32.xlu0 %v1133
    %v1135 = vpop.xlane.xlu0 %1134
    %v1136 = vsel %vm184, %v1094, -inf
    %1137 = vmax.xlane.f32.xlu0 %v1136
    %v1138 = vpop.xlane.xlu0 %1137
    %v1139 = vsel %vm184, %v1095, -inf
    %1140 = vmax.xlane.f32.xlu0 %v1139
    %v1141 = vpop.xlane.xlu0 %1140
    %v1142 = vsel %vm184, %v1096, -inf
    %1143 = vmax.xlane.f32.xlu0 %v1142
    %v1144 = vpop.xlane.xlu0 %1143
    %v1145 = vsub.f32 %v1081, %v1099
    %v1146 = vsub.f32 %v1082, %v1102
    %v1147 = vsub.f32 %v1083, %v1105
    %v1148 = vsub.f32 %v1084, %v1108
    %v1149 = vsub.f32 %v1085, %v1111
    %v1150 = vsub.f32 %v1086, %v1114
    %v1151 = vsub.f32 %v1087, %v1117
    %v1152 = vsub.f32 %v1088, %v1120
    %v1153 = vsub.f32 %v1089, %v1123
    %v1154 = vsub.f32 %v1090, %v1126
    %v1155 = vsub.f32 %v1091, %v1129
    %v1156 = vsub.f32 %v1092, %v1132
    %v1157 = vsub.f32 %v1093, %v1135
    %v1158 = vsub.f32 %v1094, %v1138
    %v1159 = vsub.f32 %v1095, %v1141
    %v1160 = vsub.f32 %v1096, %v1144
    %v1161 = vmul.f32 %v1145, 1.442695
    %v1162 = vpow.pop %v1161
    %v1163 = vmul.f32 %v1146, 1.442695
    %v1164 = vpow.pop %v1163
    %v1165 = vmul.f32 %v1147, 1.442695
    %v1166 = vpow.pop %v1165
    %v1167 = vmul.f32 %v1148, 1.442695
    %v1168 = vpow.pop %v1167
    %v1169 = vmul.f32 %v1149, 1.442695
    %v1170 = vpow.pop %v1169
    %v1171 = vmul.f32 %v1150, 1.442695
    %v1172 = vpow.pop %v1171
    %v1173 = vmul.f32 %v1151, 1.442695
    %v1174 = vpow.pop %v1173
    %v1175 = vmul.f32 %v1152, 1.442695
    %v1176 = vpow.pop %v1175
    %v1177 = vmul.f32 %v1153, 1.442695
    %v1178 = vpow.pop %v1177
    %v1179 = vmul.f32 %v1154, 1.442695
    %v1180 = vpow.pop %v1179
    %v1181 = vmul.f32 %v1155, 1.442695
    %v1182 = vpow.pop %v1181
    %v1183 = vmul.f32 %v1156, 1.442695
    %v1184 = vpow.pop %v1183
    %v1185 = vmul.f32 %v1157, 1.442695
    %v1186 = vpow.pop %v1185
    %v1187 = vmul.f32 %v1158, 1.442695
    %v1188 = vpow.pop %v1187
    %v1189 = vmul.f32 %v1159, 1.442695
    %v1190 = vpow.pop %v1189
    %v1191 = vmul.f32 %v1160, 1.442695
    %v1192 = vpow.pop %v1191
    %v1193 = vsel %vm184, %v1162, 0.0
    %1194 = vadd.xlane.f32.xlu0 %v1193
    %v1195 = vpop.xlane.xlu0 %1194
    %v1196 = vsel %vm184, %v1164, 0.0
    %1197 = vadd.xlane.f32.xlu0 %v1196
    %v1198 = vpop.xlane.xlu0 %1197
    %v1199 = vsel %vm184, %v1166, 0.0
    %1200 = vadd.xlane.f32.xlu0 %v1199
    %v1201 = vpop.xlane.xlu0 %1200
    %v1202 = vsel %vm184, %v1168, 0.0
    %1203 = vadd.xlane.f32.xlu0 %v1202
    %v1204 = vpop.xlane.xlu0 %1203
    %v1205 = vsel %vm184, %v1170, 0.0
    %1206 = vadd.xlane.f32.xlu0 %v1205
    %v1207 = vpop.xlane.xlu0 %1206
    %v1208 = vsel %vm184, %v1172, 0.0
    %1209 = vadd.xlane.f32.xlu0 %v1208
    %v1210 = vpop.xlane.xlu0 %1209
    %v1211 = vsel %vm184, %v1174, 0.0
    %1212 = vadd.xlane.f32.xlu0 %v1211
    %v1213 = vpop.xlane.xlu0 %1212
    %v1214 = vsel %vm184, %v1176, 0.0
    %1215 = vadd.xlane.f32.xlu0 %v1214
    %v1216 = vpop.xlane.xlu0 %1215
    %v1217 = vsel %vm184, %v1178, 0.0
    %1218 = vadd.xlane.f32.xlu0 %v1217
    %v1219 = vpop.xlane.xlu0 %1218
    %v1220 = vsel %vm184, %v1180, 0.0
    %1221 = vadd.xlane.f32.xlu0 %v1220
    %v1222 = vpop.xlane.xlu0 %1221
    %v1223 = vsel %vm184, %v1182, 0.0
    %1224 = vadd.xlane.f32.xlu0 %v1223
    %v1225 = vpop.xlane.xlu0 %1224
    %v1226 = vsel %vm184, %v1184, 0.0
    %1227 = vadd.xlane.f32.xlu0 %v1226
    %v1228 = vpop.xlane.xlu0 %1227
    %v1229 = vsel %vm184, %v1186, 0.0
    %1230 = vadd.xlane.f32.xlu0 %v1229
    %v1231 = vpop.xlane.xlu0 %1230
    %v1232 = vsel %vm184, %v1188, 0.0
    %1233 = vadd.xlane.f32.xlu0 %v1232
    %v1234 = vpop.xlane.xlu0 %1233
    %v1235 = vsel %vm184, %v1190, 0.0
    %1236 = vadd.xlane.f32.xlu0 %v1235
    %v1237 = vpop.xlane.xlu0 %1236
    %v1238 = vsel %vm184, %v1192, 0.0
    %1239 = vadd.xlane.f32.xlu0 %v1238
    %v1240 = vpop.xlane.xlu0 %1239
    %v1241 = vlog2.pop %v1195
    %v1242 = vmul.f32 %v1241, 0.6931472
    %v1243 = vlog2.pop %v1198
    %v1244 = vmul.f32 %v1243, 0.6931472
    %v1245 = vlog2.pop %v1201
    %v1246 = vmul.f32 %v1245, 0.6931472
    %v1247 = vlog2.pop %v1204
    %v1248 = vmul.f32 %v1247, 0.6931472
    %v1249 = vlog2.pop %v1207
    %v1250 = vmul.f32 %v1249, 0.6931472
    %v1251 = vlog2.pop %v1210
    %v1252 = vmul.f32 %v1251, 0.6931472
    %v1253 = vlog2.pop %v1213
    %v1254 = vmul.f32 %v1253, 0.6931472
    %v1255 = vlog2.pop %v1216
    %v1256 = vmul.f32 %v1255, 0.6931472
    %v1257 = vlog2.pop %v1219
    %v1258 = vmul.f32 %v1257, 0.6931472
    %v1259 = vlog2.pop %v1222
    %v1260 = vmul.f32 %v1259, 0.6931472
    %v1261 = vlog2.pop %v1225
    %v1262 = vmul.f32 %v1261, 0.6931472
    %v1263 = vlog2.pop %v1228
    %v1264 = vmul.f32 %v1263, 0.6931472
    %v1265 = vlog2.pop %v1231
    %v1266 = vmul.f32 %v1265, 0.6931472
    %v1267 = vlog2.pop %v1234
    %v1268 = vmul.f32 %v1267, 0.6931472
    %v1269 = vlog2.pop %v1237
    %v1270 = vmul.f32 %v1269, 0.6931472
    %v1271 = vlog2.pop %v1240
    %v1272 = vmul.f32 %v1271, 0.6931472
    %v1273 = vsub.f32 %v1145, %v1242
    %v1274 = vsub.f32 %v1146, %v1244
    %v1275 = vsub.f32 %v1147, %v1246
    %v1276 = vsub.f32 %v1148, %v1248
    %v1277 = vsub.f32 %v1149, %v1250
    %v1278 = vsub.f32 %v1150, %v1252
    %v1279 = vsub.f32 %v1151, %v1254
    %v1280 = vsub.f32 %v1152, %v1256
    %v1281 = vsub.f32 %v1153, %v1258
    %v1282 = vsub.f32 %v1154, %v1260
    %v1283 = vsub.f32 %v1155, %v1262
    %v1284 = vsub.f32 %v1156, %v1264
    %v1285 = vsub.f32 %v1157, %v1266
    %v1286 = vsub.f32 %v1158, %v1268
    %v1287 = vsub.f32 %v1159, %v1270
    %v1288 = vsub.f32 %v1160, %v1272
    %v1289 = vrcp.pop %v1195
    %v1290 = vmul.f32 1.0, %v1289
    %v1291 = vrcp.pop %v1198
    %v1292 = vmul.f32 1.0, %v1291
    %v1293 = vrcp.pop %v1201
    %v1294 = vmul.f32 1.0, %v1293
    %v1295 = vrcp.pop %v1204
    %v1296 = vmul.f32 1.0, %v1295
    %v1297 = vrcp.pop %v1207
    %v1298 = vmul.f32 1.0, %v1297
    %v1299 = vrcp.pop %v1210
    %v1300 = vmul.f32 1.0, %v1299
    %v1301 = vrcp.pop %v1213
    %v1302 = vmul.f32 1.0, %v1301
    %v1303 = vrcp.pop %v1216
    %v1304 = vmul.f32 1.0, %v1303
    %v1305 = vrcp.pop %v1219
    %v1306 = vmul.f32 1.0, %v1305
    %v1307 = vrcp.pop %v1222
    %v1308 = vmul.f32 1.0, %v1307
    %v1309 = vrcp.pop %v1225
    %v1310 = vmul.f32 1.0, %v1309
    %v1311 = vrcp.pop %v1228
    %v1312 = vmul.f32 1.0, %v1311
    %v1313 = vrcp.pop %v1231
    %v1314 = vmul.f32 1.0, %v1313
    %v1315 = vrcp.pop %v1234
    %v1316 = vmul.f32 1.0, %v1315
    %v1317 = vrcp.pop %v1237
    %v1318 = vmul.f32 1.0, %v1317
    %v1319 = vrcp.pop %v1240
    %v1320 = vmul.f32 1.0, %v1319
    %v1321 = vmul.f32 %v1162, %v1290
    %v1322 = vmul.f32 %v1164, %v1292
    %v1323 = vmul.f32 %v1166, %v1294
    %v1324 = vmul.f32 %v1168, %v1296
    %v1325 = vmul.f32 %v1170, %v1298
    %v1326 = vmul.f32 %v1172, %v1300
    %v1327 = vmul.f32 %v1174, %v1302
    %v1328 = vmul.f32 %v1176, %v1304
    %v1329 = vmul.f32 %v1178, %v1306
    %v1330 = vmul.f32 %v1180, %v1308
    %v1331 = vmul.f32 %v1182, %v1310
    %v1332 = vmul.f32 %v1184, %v1312
    %v1333 = vmul.f32 %v1186, %v1314
    %v1334 = vmul.f32 %v1188, %v1316
    %v1335 = vmul.f32 %v1190, %v1318
    %v1336 = vmul.f32 %v1192, %v1320
    %v1337 = vsub.f32 %v54, %v38
    %v1338 = vsub.f32 %v55, %v39
    %v1339 = vsub.f32 %v56, %v40
    %v1340 = vsub.f32 %v57, %v41
    %v1341 = vsub.f32 %v58, %v42
    %v1342 = vsub.f32 %v59, %v43
    %v1343 = vsub.f32 %v60, %v44
    %v1344 = vsub.f32 %v61, %v45
    %v1345 = vsub.f32 %v62, %v46
    %v1346 = vsub.f32 %v63, %v47
    %v1347 = vsub.f32 %v64, %v48
    %v1348 = vsub.f32 %v65, %v49
    %v1349 = vsub.f32 %v66, %v50
    %v1350 = vsub.f32 %v67, %v51
    %v1351 = vsub.f32 %v68, %v52
    %v1352 = vsub.f32 %v69, %v53
    %v1353 = vsub.f32 %v761, %v1273
    %v1354 = vsub.f32 %v762, %v1274
    %v1355 = vsub.f32 %v763, %v1275
    %v1356 = vsub.f32 %v764, %v1276
    %v1357 = vsub.f32 %v765, %v1277
    %v1358 = vsub.f32 %v766, %v1278
    %v1359 = vsub.f32 %v767, %v1279
    %v1360 = vsub.f32 %v768, %v1280
    %v1361 = vsub.f32 %v769, %v1281
    %v1362 = vsub.f32 %v770, %v1282
    %v1363 = vsub.f32 %v771, %v1283
    %v1364 = vsub.f32 %v772, %v1284
    %v1365 = vsub.f32 %v773, %v1285
    %v1366 = vsub.f32 %v774, %v1286
    %v1367 = vsub.f32 %v775, %v1287
    %v1368 = vsub.f32 %v776, %v1288
    %v1369 = vmul.f32 %v809, %v1353
    %v1370 = vmul.f32 %v810, %v1354
    %v1371 = vmul.f32 %v811, %v1355
    %v1372 = vmul.f32 %v812, %v1356
    %v1373 = vmul.f32 %v813, %v1357
    %v1374 = vmul.f32 %v814, %v1358
    %v1375 = vmul.f32 %v815, %v1359
    %v1376 = vmul.f32 %v816, %v1360
    %v1377 = vmul.f32 %v817, %v1361
    %v1378 = vmul.f32 %v818, %v1362
    %v1379 = vmul.f32 %v819, %v1363
    %v1380 = vmul.f32 %v820, %v1364
    %v1381 = vmul.f32 %v821, %v1365
    %v1382 = vmul.f32 %v822, %v1366
    %v1383 = vmul.f32 %v823, %v1367
    %v1384 = vmul.f32 %v824, %v1368
    %v1385 = vmul.f32 %v1369, 16.0
    %v1386 = vmul.f32 %v1370, 16.0
    %v1387 = vmul.f32 %v1371, 16.0
    %v1388 = vmul.f32 %v1372, 16.0
    %v1389 = vmul.f32 %v1373, 16.0
    %v1390 = vmul.f32 %v1374, 16.0
    %v1391 = vmul.f32 %v1375, 16.0
    %v1392 = vmul.f32 %v1376, 16.0
    %v1393 = vmul.f32 %v1377, 16.0
    %v1394 = vmul.f32 %v1378, 16.0
    %v1395 = vmul.f32 %v1379, 16.0
    %v1396 = vmul.f32 %v1380, 16.0
    %v1397 = vmul.f32 %v1381, 16.0
    %v1398 = vmul.f32 %v1382, 16.0
    %v1399 = vmul.f32 %v1383, 16.0
    %v1400 = vmul.f32 %v1384, 16.0
    %v1401 = vsub.f32 %v1273, %v761
    %v1402 = vsub.f32 %v1274, %v762
    %v1403 = vsub.f32 %v1275, %v763
    %v1404 = vsub.f32 %v1276, %v764
    %v1405 = vsub.f32 %v1277, %v765
    %v1406 = vsub.f32 %v1278, %v766
    %v1407 = vsub.f32 %v1279, %v767
    %v1408 = vsub.f32 %v1280, %v768
    %v1409 = vsub.f32 %v1281, %v769
    %v1410 = vsub.f32 %v1282, %v770
    %v1411 = vsub.f32 %v1283, %v771
    %v1412 = vsub.f32 %v1284, %v772
    %v1413 = vsub.f32 %v1285, %v773
    %v1414 = vsub.f32 %v1286, %v774
    %v1415 = vsub.f32 %v1287, %v775
    %v1416 = vsub.f32 %v1288, %v776
    %v1417 = vmul.f32 %v1321, %v1401
    %v1418 = vmul.f32 %v1322, %v1402
    %v1419 = vmul.f32 %v1323, %v1403
    %v1420 = vmul.f32 %v1324, %v1404
    %v1421 = vmul.f32 %v1325, %v1405
    %v1422 = vmul.f32 %v1326, %v1406
    %v1423 = vmul.f32 %v1327, %v1407
    %v1424 = vmul.f32 %v1328, %v1408
    %v1425 = vmul.f32 %v1329, %v1409
    %v1426 = vmul.f32 %v1330, %v1410
    %v1427 = vmul.f32 %v1331, %v1411
    %v1428 = vmul.f32 %v1332, %v1412
    %v1429 = vmul.f32 %v1333, %v1413
    %v1430 = vmul.f32 %v1334, %v1414
    %v1431 = vmul.f32 %v1335, %v1415
    %v1432 = vmul.f32 %v1336, %v1416
    %v1433 = vmul.f32 %v1417, 8.0
    %v1434 = vmul.f32 %v1418, 8.0
    %v1435 = vmul.f32 %v1419, 8.0
    %v1436 = vmul.f32 %v1420, 8.0
    %v1437 = vmul.f32 %v1421, 8.0
    %v1438 = vmul.f32 %v1422, 8.0
    %v1439 = vmul.f32 %v1423, 8.0
    %v1440 = vmul.f32 %v1424, 8.0
    %v1441 = vmul.f32 %v1425, 8.0
    %v1442 = vmul.f32 %v1426, 8.0
    %v1443 = vmul.f32 %v1427, 8.0
    %v1444 = vmul.f32 %v1428, 8.0
    %v1445 = vmul.f32 %v1429, 8.0
    %v1446 = vmul.f32 %v1430, 8.0
    %v1447 = vmul.f32 %v1431, 8.0
    %v1448 = vmul.f32 %v1432, 8.0
    %v1449 = vadd.f32 %v1385, %v1433
    %v1450 = vadd.f32 %v1386, %v1434
    %v1451 = vadd.f32 %v1387, %v1435
    %v1452 = vadd.f32 %v1388, %v1436
    %v1453 = vadd.f32 %v1389, %v1437
    %v1454 = vadd.f32 %v1390, %v1438
    %v1455 = vadd.f32 %v1391, %v1439
    %v1456 = vadd.f32 %v1392, %v1440
    %v1457 = vadd.f32 %v1393, %v1441
    %v1458 = vadd.f32 %v1394, %v1442
    %v1459 = vadd.f32 %v1395, %v1443
    %v1460 = vadd.f32 %v1396, %v1444
    %v1461 = vadd.f32 %v1397, %v1445
    %v1462 = vadd.f32 %v1398, %v1446
    %v1463 = vadd.f32 %v1399, %v1447
    %v1464 = vadd.f32 %v1400, %v1448
    %v1465 = vmul.f32 %v168, %v553
    %v1466 = vmul.f32 %v169, %v554
    %v1467 = vmul.f32 %v170, %v555
    %v1468 = vmul.f32 %v171, %v556
    %v1469 = vmul.f32 %v172, %v557
    %v1470 = vmul.f32 %v173, %v558
    %v1471 = vmul.f32 %v174, %v559
    %v1472 = vmul.f32 %v175, %v560
    %v1473 = vmul.f32 %v176, %v561
    %v1474 = vmul.f32 %v177, %v562
    %v1475 = vmul.f32 %v178, %v563
    %v1476 = vmul.f32 %v179, %v564
    %v1477 = vmul.f32 %v180, %v565
    %v1478 = vmul.f32 %v181, %v566
    %v1479 = vmul.f32 %v182, %v567
    %v1480 = vmul.f32 %v183, %v568
    %v1481 = vmul.f32 %v1465, 0.3
    %v1482 = vmul.f32 %v1466, 0.3
    %v1483 = vmul.f32 %v1467, 0.3
    %v1484 = vmul.f32 %v1468, 0.3
    %v1485 = vmul.f32 %v1469, 0.3
    %v1486 = vmul.f32 %v1470, 0.3
    %v1487 = vmul.f32 %v1471, 0.3
    %v1488 = vmul.f32 %v1472, 0.3
    %v1489 = vmul.f32 %v1473, 0.3
    %v1490 = vmul.f32 %v1474, 0.3
    %v1491 = vmul.f32 %v1475, 0.3
    %v1492 = vmul.f32 %v1476, 0.3
    %v1493 = vmul.f32 %v1477, 0.3
    %v1494 = vmul.f32 %v1478, 0.3
    %v1495 = vmul.f32 %v1479, 0.3
    %v1496 = vmul.f32 %v1480, 0.3
    %v1497 = vsub.f32 %v1449, %v1481
    %v1498 = vsub.f32 %v1450, %v1482
    %v1499 = vsub.f32 %v1451, %v1483
    %v1500 = vsub.f32 %v1452, %v1484
    %v1501 = vsub.f32 %v1453, %v1485
    %v1502 = vsub.f32 %v1454, %v1486
    %v1503 = vsub.f32 %v1455, %v1487
    %v1504 = vsub.f32 %v1456, %v1488
    %v1505 = vsub.f32 %v1457, %v1489
    %v1506 = vsub.f32 %v1458, %v1490
    %v1507 = vsub.f32 %v1459, %v1491
    %v1508 = vsub.f32 %v1460, %v1492
    %v1509 = vsub.f32 %v1461, %v1493
    %v1510 = vsub.f32 %v1462, %v1494
    %v1511 = vsub.f32 %v1463, %v1495
    %v1512 = vsub.f32 %v1464, %v1496
    %v1513 = vmul.f32 %v1337, %v1337
    %v1514 = vmul.f32 %v1338, %v1338
    %v1515 = vmul.f32 %v1339, %v1339
    %v1516 = vmul.f32 %v1340, %v1340
    %v1517 = vmul.f32 %v1341, %v1341
    %v1518 = vmul.f32 %v1342, %v1342
    %v1519 = vmul.f32 %v1343, %v1343
    %v1520 = vmul.f32 %v1344, %v1344
    %v1521 = vmul.f32 %v1345, %v1345
    %v1522 = vmul.f32 %v1346, %v1346
    %v1523 = vmul.f32 %v1347, %v1347
    %v1524 = vmul.f32 %v1348, %v1348
    %v1525 = vmul.f32 %v1349, %v1349
    %v1526 = vmul.f32 %v1350, %v1350
    %v1527 = vmul.f32 %v1351, %v1351
    %v1528 = vmul.f32 %v1352, %v1352
    %v1529 = vmul.f32 %v1513, 0.0125
    %v1530 = vmul.f32 %v1514, 0.0125
    %v1531 = vmul.f32 %v1515, 0.0125
    %v1532 = vmul.f32 %v1516, 0.0125
    %v1533 = vmul.f32 %v1517, 0.0125
    %v1534 = vmul.f32 %v1518, 0.0125
    %v1535 = vmul.f32 %v1519, 0.0125
    %v1536 = vmul.f32 %v1520, 0.0125
    %v1537 = vmul.f32 %v1521, 0.0125
    %v1538 = vmul.f32 %v1522, 0.0125
    %v1539 = vmul.f32 %v1523, 0.0125
    %v1540 = vmul.f32 %v1524, 0.0125
    %v1541 = vmul.f32 %v1525, 0.0125
    %v1542 = vmul.f32 %v1526, 0.0125
    %v1543 = vmul.f32 %v1527, 0.0125
    %v1544 = vmul.f32 %v1528, 0.0125
    %v1545 = vadd.f32 %v1497, %v1529
    %v1546 = vadd.f32 %v1498, %v1530
    %v1547 = vadd.f32 %v1499, %v1531
    %v1548 = vadd.f32 %v1500, %v1532
    %v1549 = vadd.f32 %v1501, %v1533
    %v1550 = vadd.f32 %v1502, %v1534
    %v1551 = vadd.f32 %v1503, %v1535
    %v1552 = vadd.f32 %v1504, %v1536
    %v1553 = vadd.f32 %v1505, %v1537
    %v1554 = vadd.f32 %v1506, %v1538
    %v1555 = vadd.f32 %v1507, %v1539
    %v1556 = vadd.f32 %v1508, %v1540
    %v1557 = vadd.f32 %v1509, %v1541
    %v1558 = vadd.f32 %v1510, %v1542
    %v1559 = vadd.f32 %v1511, %v1543
    %v1560 = vadd.f32 %v1512, %v1544
    %v1561 = vsub.f32 %v1017, %v761
    %v1562 = vsub.f32 %v1018, %v762
    %v1563 = vsub.f32 %v1019, %v763
    %v1564 = vsub.f32 %v1020, %v764
    %v1565 = vsub.f32 %v1021, %v765
    %v1566 = vsub.f32 %v1022, %v766
    %v1567 = vsub.f32 %v1023, %v767
    %v1568 = vsub.f32 %v1024, %v768
    %v1569 = vsub.f32 %v1025, %v769
    %v1570 = vsub.f32 %v1026, %v770
    %v1571 = vsub.f32 %v1027, %v771
    %v1572 = vsub.f32 %v1028, %v772
    %v1573 = vsub.f32 %v1029, %v773
    %v1574 = vsub.f32 %v1030, %v774
    %v1575 = vsub.f32 %v1031, %v775
    %v1576 = vsub.f32 %v1032, %v776
    %v1577 = vmul.f32 %v1065, %v1561
    %v1578 = vmul.f32 %v1066, %v1562
    %v1579 = vmul.f32 %v1067, %v1563
    %v1580 = vmul.f32 %v1068, %v1564
    %v1581 = vmul.f32 %v1069, %v1565
    %v1582 = vmul.f32 %v1070, %v1566
    %v1583 = vmul.f32 %v1071, %v1567
    %v1584 = vmul.f32 %v1072, %v1568
    %v1585 = vmul.f32 %v1073, %v1569
    %v1586 = vmul.f32 %v1074, %v1570
    %v1587 = vmul.f32 %v1075, %v1571
    %v1588 = vmul.f32 %v1076, %v1572
    %v1589 = vmul.f32 %v1077, %v1573
    %v1590 = vmul.f32 %v1078, %v1574
    %v1591 = vmul.f32 %v1079, %v1575
    %v1592 = vmul.f32 %v1080, %v1576
    %v1593 = vmul.f32 %v1577, 11.2
    %v1594 = vmul.f32 %v1578, 11.2
    %v1595 = vmul.f32 %v1579, 11.2
    %v1596 = vmul.f32 %v1580, 11.2
    %v1597 = vmul.f32 %v1581, 11.2
    %v1598 = vmul.f32 %v1582, 11.2
    %v1599 = vmul.f32 %v1583, 11.2
    %v1600 = vmul.f32 %v1584, 11.2
    %v1601 = vmul.f32 %v1585, 11.2
    %v1602 = vmul.f32 %v1586, 11.2
    %v1603 = vmul.f32 %v1587, 11.2
    %v1604 = vmul.f32 %v1588, 11.2
    %v1605 = vmul.f32 %v1589, 11.2
    %v1606 = vmul.f32 %v1590, 11.2
    %v1607 = vmul.f32 %v1591, 11.2
    %v1608 = vmul.f32 %v1592, 11.2
    %v1609 = vadd.f32 %v1545, %v1593
    %v1610 = vadd.f32 %v1546, %v1594
    %v1611 = vadd.f32 %v1547, %v1595
    %v1612 = vadd.f32 %v1548, %v1596
    %v1613 = vadd.f32 %v1549, %v1597
    %v1614 = vadd.f32 %v1550, %v1598
    %v1615 = vadd.f32 %v1551, %v1599
    %v1616 = vadd.f32 %v1552, %v1600
    %v1617 = vadd.f32 %v1553, %v1601
    %v1618 = vadd.f32 %v1554, %v1602
    %v1619 = vadd.f32 %v1555, %v1603
    %v1620 = vadd.f32 %v1556, %v1604
    %v1621 = vadd.f32 %v1557, %v1605
    %v1622 = vadd.f32 %v1558, %v1606
    %v1623 = vadd.f32 %v1559, %v1607
    %v1624 = vadd.f32 %v1560, %v1608
    %v1625 = vsel %vm184, %v1609, 0.0
    %1626 = vadd.xlane.f32.xlu0 %v1625
    %v1627 = vpop.xlane.xlu0 %1626
    %v1628 = vsel %vm184, %v1610, 0.0
    %1629 = vadd.xlane.f32.xlu0 %v1628
    %v1630 = vpop.xlane.xlu0 %1629
    %v1631 = vsel %vm184, %v1611, 0.0
    %1632 = vadd.xlane.f32.xlu0 %v1631
    %v1633 = vpop.xlane.xlu0 %1632
    %v1634 = vsel %vm184, %v1612, 0.0
    %1635 = vadd.xlane.f32.xlu0 %v1634
    %v1636 = vpop.xlane.xlu0 %1635
    %v1637 = vsel %vm184, %v1613, 0.0
    %1638 = vadd.xlane.f32.xlu0 %v1637
    %v1639 = vpop.xlane.xlu0 %1638
    %v1640 = vsel %vm184, %v1614, 0.0
    %1641 = vadd.xlane.f32.xlu0 %v1640
    %v1642 = vpop.xlane.xlu0 %1641
    %v1643 = vsel %vm184, %v1615, 0.0
    %1644 = vadd.xlane.f32.xlu0 %v1643
    %v1645 = vpop.xlane.xlu0 %1644
    %v1646 = vsel %vm184, %v1616, 0.0
    %1647 = vadd.xlane.f32.xlu0 %v1646
    %v1648 = vpop.xlane.xlu0 %1647
    %v1649 = vsel %vm184, %v1617, 0.0
    %1650 = vadd.xlane.f32.xlu0 %v1649
    %v1651 = vpop.xlane.xlu0 %1650
    %v1652 = vsel %vm184, %v1618, 0.0
    %1653 = vadd.xlane.f32.xlu0 %v1652
    %v1654 = vpop.xlane.xlu0 %1653
    %v1655 = vsel %vm184, %v1619, 0.0
    %1656 = vadd.xlane.f32.xlu0 %v1655
    %v1657 = vpop.xlane.xlu0 %1656
    %v1658 = vsel %vm184, %v1620, 0.0
    %1659 = vadd.xlane.f32.xlu0 %v1658
    %v1660 = vpop.xlane.xlu0 %1659
    %v1661 = vsel %vm184, %v1621, 0.0
    %1662 = vadd.xlane.f32.xlu0 %v1661
    %v1663 = vpop.xlane.xlu0 %1662
    %v1664 = vsel %vm184, %v1622, 0.0
    %1665 = vadd.xlane.f32.xlu0 %v1664
    %v1666 = vpop.xlane.xlu0 %1665
    %v1667 = vsel %vm184, %v1623, 0.0
    %1668 = vadd.xlane.f32.xlu0 %v1667
    %v1669 = vpop.xlane.xlu0 %1668
    %v1670 = vsel %vm184, %v1624, 0.0
    %1671 = vadd.xlane.f32.xlu0 %v1670
    %v1672 = vpop.xlane.xlu0 %1671
    %v1673 = vmul.f32 %v168, %v361
    %v1674 = vmul.f32 %v169, %v362
    %v1675 = vmul.f32 %v170, %v363
    %v1676 = vmul.f32 %v171, %v364
    %v1677 = vmul.f32 %v172, %v365
    %v1678 = vmul.f32 %v173, %v366
    %v1679 = vmul.f32 %v174, %v367
    %v1680 = vmul.f32 %v175, %v368
    %v1681 = vmul.f32 %v176, %v369
    %v1682 = vmul.f32 %v177, %v370
    %v1683 = vmul.f32 %v178, %v371
    %v1684 = vmul.f32 %v179, %v372
    %v1685 = vmul.f32 %v180, %v373
    %v1686 = vmul.f32 %v181, %v374
    %v1687 = vmul.f32 %v182, %v375
    %v1688 = vmul.f32 %v183, %v376
    %v1689 = vsel %vm184, %v1673, 0.0
    %1690 = vadd.xlane.f32.xlu0 %v1689
    %v1691 = vpop.xlane.xlu0 %1690
    %v1692 = vsel %vm184, %v1674, 0.0
    %1693 = vadd.xlane.f32.xlu0 %v1692
    %v1694 = vpop.xlane.xlu0 %1693
    %v1695 = vsel %vm184, %v1675, 0.0
    %1696 = vadd.xlane.f32.xlu0 %v1695
    %v1697 = vpop.xlane.xlu0 %1696
    %v1698 = vsel %vm184, %v1676, 0.0
    %1699 = vadd.xlane.f32.xlu0 %v1698
    %v1700 = vpop.xlane.xlu0 %1699
    %v1701 = vsel %vm184, %v1677, 0.0
    %1702 = vadd.xlane.f32.xlu0 %v1701
    %v1703 = vpop.xlane.xlu0 %1702
    %v1704 = vsel %vm184, %v1678, 0.0
    %1705 = vadd.xlane.f32.xlu0 %v1704
    %v1706 = vpop.xlane.xlu0 %1705
    %v1707 = vsel %vm184, %v1679, 0.0
    %1708 = vadd.xlane.f32.xlu0 %v1707
    %v1709 = vpop.xlane.xlu0 %1708
    %v1710 = vsel %vm184, %v1680, 0.0
    %1711 = vadd.xlane.f32.xlu0 %v1710
    %v1712 = vpop.xlane.xlu0 %1711
    %v1713 = vsel %vm184, %v1681, 0.0
    %1714 = vadd.xlane.f32.xlu0 %v1713
    %v1715 = vpop.xlane.xlu0 %1714
    %v1716 = vsel %vm184, %v1682, 0.0
    %1717 = vadd.xlane.f32.xlu0 %v1716
    %v1718 = vpop.xlane.xlu0 %1717
    %v1719 = vsel %vm184, %v1683, 0.0
    %1720 = vadd.xlane.f32.xlu0 %v1719
    %v1721 = vpop.xlane.xlu0 %1720
    %v1722 = vsel %vm184, %v1684, 0.0
    %1723 = vadd.xlane.f32.xlu0 %v1722
    %v1724 = vpop.xlane.xlu0 %1723
    %v1725 = vsel %vm184, %v1685, 0.0
    %1726 = vadd.xlane.f32.xlu0 %v1725
    %v1727 = vpop.xlane.xlu0 %1726
    %v1728 = vsel %vm184, %v1686, 0.0
    %1729 = vadd.xlane.f32.xlu0 %v1728
    %v1730 = vpop.xlane.xlu0 %1729
    %v1731 = vsel %vm184, %v1687, 0.0
    %1732 = vadd.xlane.f32.xlu0 %v1731
    %v1733 = vpop.xlane.xlu0 %1732
    %v1734 = vsel %vm184, %v1688, 0.0
    %1735 = vadd.xlane.f32.xlu0 %v1734
    %v1736 = vpop.xlane.xlu0 %1735
    %v1737 = vsub.f32 0.0, %v1691
    %v1738 = vsub.f32 0.0, %v1694
    %v1739 = vsub.f32 0.0, %v1697
    %v1740 = vsub.f32 0.0, %v1700
    %v1741 = vsub.f32 0.0, %v1703
    %v1742 = vsub.f32 0.0, %v1706
    %v1743 = vsub.f32 0.0, %v1709
    %v1744 = vsub.f32 0.0, %v1712
    %v1745 = vsub.f32 0.0, %v1715
    %v1746 = vsub.f32 0.0, %v1718
    %v1747 = vsub.f32 0.0, %v1721
    %v1748 = vsub.f32 0.0, %v1724
    %v1749 = vsub.f32 0.0, %v1727
    %v1750 = vsub.f32 0.0, %v1730
    %v1751 = vsub.f32 0.0, %v1733
    %v1752 = vsub.f32 0.0, %v1736
    %v1753 = vmul.f32 %v1627, 0.5
    %v1754 = vmul.f32 %v1630, 0.5
    %v1755 = vmul.f32 %v1633, 0.5
    %v1756 = vmul.f32 %v1636, 0.5
    %v1757 = vmul.f32 %v1639, 0.5
    %v1758 = vmul.f32 %v1642, 0.5
    %v1759 = vmul.f32 %v1645, 0.5
    %v1760 = vmul.f32 %v1648, 0.5
    %v1761 = vmul.f32 %v1651, 0.5
    %v1762 = vmul.f32 %v1654, 0.5
    %v1763 = vmul.f32 %v1657, 0.5
    %v1764 = vmul.f32 %v1660, 0.5
    %v1765 = vmul.f32 %v1663, 0.5
    %v1766 = vmul.f32 %v1666, 0.5
    %v1767 = vmul.f32 %v1669, 0.5
    %v1768 = vmul.f32 %v1672, 0.5
    %v1769 = vadd.f32 %v1737, %v1753
    %v1770 = vadd.f32 %v1738, %v1754
    %v1771 = vadd.f32 %v1739, %v1755
    %v1772 = vadd.f32 %v1740, %v1756
    %v1773 = vadd.f32 %v1741, %v1757
    %v1774 = vadd.f32 %v1742, %v1758
    %v1775 = vadd.f32 %v1743, %v1759
    %v1776 = vadd.f32 %v1744, %v1760
    %v1777 = vadd.f32 %v1745, %v1761
    %v1778 = vadd.f32 %v1746, %v1762
    %v1779 = vadd.f32 %v1747, %v1763
    %v1780 = vadd.f32 %v1748, %v1764
    %v1781 = vadd.f32 %v1749, %v1765
    %v1782 = vadd.f32 %v1750, %v1766
    %v1783 = vadd.f32 %v1751, %v1767
    %v1784 = vadd.f32 %v1752, %v1768
    %v1801 = vlaneseq
    %v1802 = vshrl.u32 %v1801, 7
    %v1803 = vsub.s32 %v87, %v1802
    %v1804 = vrot.slane %v1769, %v1803
    %v1805 = vadd.s32 %v87, 4294967288
    %v1806 = vlaneseq
    %v1807 = vshrl.u32 %v1806, 7
    %v1808 = vsub.s32 %v1805, %v1807
    %v1809 = vrot.slane %v1770, %v1808
    %vm1810 = vcmask 130112
    %v1811 = vsel %vm1810, %v1809, %v1804
    %v1812 = vadd.s32 %v87, 4294967280
    %v1813 = vlaneseq
    %v1814 = vshrl.u32 %v1813, 7
    %v1815 = vsub.s32 %v1812, %v1814
    %v1816 = vrot.slane %v1771, %v1815
    %vm1817 = vcmask 195712
    %v1818 = vsel %vm1817, %v1816, %v1811
    %v1819 = vadd.s32 %v87, 4294967272
    %v1820 = vlaneseq
    %v1821 = vshrl.u32 %v1820, 7
    %v1822 = vsub.s32 %v1819, %v1821
    %v1823 = vrot.slane %v1772, %v1822
    %vm1824 = vcmask 261312
    %v1825 = vsel %vm1824, %v1823, %v1818
    %v1826 = vadd.s32 %v87, 4294967264
    %v1827 = vlaneseq
    %v1828 = vshrl.u32 %v1827, 7
    %v1829 = vsub.s32 %v1826, %v1828
    %v1830 = vrot.slane %v1773, %v1829
    %vm1831 = vcmask 326912
    %v1832 = vsel %vm1831, %v1830, %v1825
    %v1833 = vadd.s32 %v87, 4294967256
    %v1834 = vlaneseq
    %v1835 = vshrl.u32 %v1834, 7
    %v1836 = vsub.s32 %v1833, %v1835
    %v1837 = vrot.slane %v1774, %v1836
    %vm1838 = vcmask 392512
    %v1839 = vsel %vm1838, %v1837, %v1832
    %v1840 = vadd.s32 %v87, 4294967248
    %v1841 = vlaneseq
    %v1842 = vshrl.u32 %v1841, 7
    %v1843 = vsub.s32 %v1840, %v1842
    %v1844 = vrot.slane %v1775, %v1843
    %vm1845 = vcmask 458112
    %v1846 = vsel %vm1845, %v1844, %v1839
    %v1847 = vadd.s32 %v87, 4294967240
    %v1848 = vlaneseq
    %v1849 = vshrl.u32 %v1848, 7
    %v1850 = vsub.s32 %v1847, %v1849
    %v1851 = vrot.slane %v1776, %v1850
    %vm1852 = vcmask 523712
    %v1853 = vsel %vm1852, %v1851, %v1846
    %v1854 = vadd.s32 %v87, 4294967232
    %v1855 = vlaneseq
    %v1856 = vshrl.u32 %v1855, 7
    %v1857 = vsub.s32 %v1854, %v1856
    %v1858 = vrot.slane %v1777, %v1857
    %vm1859 = vcmask 589312
    %v1860 = vsel %vm1859, %v1858, %v1853
    %v1861 = vadd.s32 %v87, 4294967224
    %v1862 = vlaneseq
    %v1863 = vshrl.u32 %v1862, 7
    %v1864 = vsub.s32 %v1861, %v1863
    %v1865 = vrot.slane %v1778, %v1864
    %vm1866 = vcmask 654912
    %v1867 = vsel %vm1866, %v1865, %v1860
    %v1868 = vadd.s32 %v87, 4294967216
    %v1869 = vlaneseq
    %v1870 = vshrl.u32 %v1869, 7
    %v1871 = vsub.s32 %v1868, %v1870
    %v1872 = vrot.slane %v1779, %v1871
    %vm1873 = vcmask 720512
    %v1874 = vsel %vm1873, %v1872, %v1867
    %v1875 = vadd.s32 %v87, 4294967208
    %v1876 = vlaneseq
    %v1877 = vshrl.u32 %v1876, 7
    %v1878 = vsub.s32 %v1875, %v1877
    %v1879 = vrot.slane %v1780, %v1878
    %vm1880 = vcmask 786112
    %v1881 = vsel %vm1880, %v1879, %v1874
    %v1882 = vadd.s32 %v87, 4294967200
    %v1883 = vlaneseq
    %v1884 = vshrl.u32 %v1883, 7
    %v1885 = vsub.s32 %v1882, %v1884
    %v1886 = vrot.slane %v1781, %v1885
    %vm1887 = vcmask 851712
    %v1888 = vsel %vm1887, %v1886, %v1881
    %v1889 = vadd.s32 %v87, 4294967192
    %v1890 = vlaneseq
    %v1891 = vshrl.u32 %v1890, 7
    %v1892 = vsub.s32 %v1889, %v1891
    %v1893 = vrot.slane %v1782, %v1892
    %vm1894 = vcmask 917312
    %v1895 = vsel %vm1894, %v1893, %v1888
    %v1896 = vadd.s32 %v87, 4294967184
    %v1897 = vlaneseq
    %v1898 = vshrl.u32 %v1897, 7
    %v1899 = vsub.s32 %v1896, %v1898
    %v1900 = vrot.slane %v1783, %v1899
    %vm1901 = vcmask 982912
    %v1902 = vsel %vm1901, %v1900, %v1895
    %v1903 = vadd.s32 %v87, 4294967176
    %v1904 = vlaneseq
    %v1905 = vshrl.u32 %v1904, 7
    %v1906 = vsub.s32 %v1903, %v1905
    %v1907 = vrot.slane %v1784, %v1906
    %vm1908 = vcmask 1048512
    %v1909 = vsel %vm1908, %v1907, %v1902
    %1911 = vst [vmem:[#allocation2] sm:$0x1] %v1909
    %v1928 = vlaneseq
    %v1929 = vshrl.u32 %v1928, 7
    %v1930 = vsub.s32 %v87, %v1929
    %v1931 = vrot.slane %v1737, %v1930
    %v1932 = vlaneseq
    %v1933 = vshrl.u32 %v1932, 7
    %v1934 = vsub.s32 %v1805, %v1933
    %v1935 = vrot.slane %v1738, %v1934
    %v1936 = vsel %vm1810, %v1935, %v1931
    %v1937 = vlaneseq
    %v1938 = vshrl.u32 %v1937, 7
    %v1939 = vsub.s32 %v1812, %v1938
    %v1940 = vrot.slane %v1739, %v1939
    %v1941 = vsel %vm1817, %v1940, %v1936
    %v1942 = vlaneseq
    %v1943 = vshrl.u32 %v1942, 7
    %v1944 = vsub.s32 %v1819, %v1943
    %v1945 = vrot.slane %v1740, %v1944
    %v1946 = vsel %vm1824, %v1945, %v1941
    %v1947 = vlaneseq
    %v1948 = vshrl.u32 %v1947, 7
    %v1949 = vsub.s32 %v1826, %v1948
    %v1950 = vrot.slane %v1741, %v1949
    %v1951 = vsel %vm1831, %v1950, %v1946
    %v1952 = vlaneseq
    %v1953 = vshrl.u32 %v1952, 7
    %v1954 = vsub.s32 %v1833, %v1953
    %v1955 = vrot.slane %v1742, %v1954
    %v1956 = vsel %vm1838, %v1955, %v1951
    %v1957 = vlaneseq
    %v1958 = vshrl.u32 %v1957, 7
    %v1959 = vsub.s32 %v1840, %v1958
    %v1960 = vrot.slane %v1743, %v1959
    %v1961 = vsel %vm1845, %v1960, %v1956
    %v1962 = vlaneseq
    %v1963 = vshrl.u32 %v1962, 7
    %v1964 = vsub.s32 %v1847, %v1963
    %v1965 = vrot.slane %v1744, %v1964
    %v1966 = vsel %vm1852, %v1965, %v1961
    %v1967 = vlaneseq
    %v1968 = vshrl.u32 %v1967, 7
    %v1969 = vsub.s32 %v1854, %v1968
    %v1970 = vrot.slane %v1745, %v1969
    %v1971 = vsel %vm1859, %v1970, %v1966
    %v1972 = vlaneseq
    %v1973 = vshrl.u32 %v1972, 7
    %v1974 = vsub.s32 %v1861, %v1973
    %v1975 = vrot.slane %v1746, %v1974
    %v1976 = vsel %vm1866, %v1975, %v1971
    %v1977 = vlaneseq
    %v1978 = vshrl.u32 %v1977, 7
    %v1979 = vsub.s32 %v1868, %v1978
    %v1980 = vrot.slane %v1747, %v1979
    %v1981 = vsel %vm1873, %v1980, %v1976
    %v1982 = vlaneseq
    %v1983 = vshrl.u32 %v1982, 7
    %v1984 = vsub.s32 %v1875, %v1983
    %v1985 = vrot.slane %v1748, %v1984
    %v1986 = vsel %vm1880, %v1985, %v1981
    %v1987 = vlaneseq
    %v1988 = vshrl.u32 %v1987, 7
    %v1989 = vsub.s32 %v1882, %v1988
    %v1990 = vrot.slane %v1749, %v1989
    %v1991 = vsel %vm1887, %v1990, %v1986
    %v1992 = vlaneseq
    %v1993 = vshrl.u32 %v1992, 7
    %v1994 = vsub.s32 %v1889, %v1993
    %v1995 = vrot.slane %v1750, %v1994
    %v1996 = vsel %vm1894, %v1995, %v1991
    %v1997 = vlaneseq
    %v1998 = vshrl.u32 %v1997, 7
    %v1999 = vsub.s32 %v1896, %v1998
    %v2000 = vrot.slane %v1751, %v1999
    %v2001 = vsel %vm1901, %v2000, %v1996
    %v2002 = vlaneseq
    %v2003 = vshrl.u32 %v2002, 7
    %v2004 = vsub.s32 %v1903, %v2003
    %v2005 = vrot.slane %v1752, %v2004
    %v2006 = vsel %vm1908, %v2005, %v2001
    %2008 = vst [vmem:[#allocation4] sm:$0x1] %v2006
    %v2025 = vlaneseq
    %v2026 = vshrl.u32 %v2025, 7
    %v2027 = vsub.s32 %v87, %v2026
    %v2028 = vrot.slane %v1627, %v2027
    %v2029 = vlaneseq
    %v2030 = vshrl.u32 %v2029, 7
    %v2031 = vsub.s32 %v1805, %v2030
    %v2032 = vrot.slane %v1630, %v2031
    %v2033 = vsel %vm1810, %v2032, %v2028
    %v2034 = vlaneseq
    %v2035 = vshrl.u32 %v2034, 7
    %v2036 = vsub.s32 %v1812, %v2035
    %v2037 = vrot.slane %v1633, %v2036
    %v2038 = vsel %vm1817, %v2037, %v2033
    %v2039 = vlaneseq
    %v2040 = vshrl.u32 %v2039, 7
    %v2041 = vsub.s32 %v1819, %v2040
    %v2042 = vrot.slane %v1636, %v2041
    %v2043 = vsel %vm1824, %v2042, %v2038
    %v2044 = vlaneseq
    %v2045 = vshrl.u32 %v2044, 7
    %v2046 = vsub.s32 %v1826, %v2045
    %v2047 = vrot.slane %v1639, %v2046
    %v2048 = vsel %vm1831, %v2047, %v2043
    %v2049 = vlaneseq
    %v2050 = vshrl.u32 %v2049, 7
    %v2051 = vsub.s32 %v1833, %v2050
    %v2052 = vrot.slane %v1642, %v2051
    %v2053 = vsel %vm1838, %v2052, %v2048
    %v2054 = vlaneseq
    %v2055 = vshrl.u32 %v2054, 7
    %v2056 = vsub.s32 %v1840, %v2055
    %v2057 = vrot.slane %v1645, %v2056
    %v2058 = vsel %vm1845, %v2057, %v2053
    %v2059 = vlaneseq
    %v2060 = vshrl.u32 %v2059, 7
    %v2061 = vsub.s32 %v1847, %v2060
    %v2062 = vrot.slane %v1648, %v2061
    %v2063 = vsel %vm1852, %v2062, %v2058
    %v2064 = vlaneseq
    %v2065 = vshrl.u32 %v2064, 7
    %v2066 = vsub.s32 %v1854, %v2065
    %v2067 = vrot.slane %v1651, %v2066
    %v2068 = vsel %vm1859, %v2067, %v2063
    %v2069 = vlaneseq
    %v2070 = vshrl.u32 %v2069, 7
    %v2071 = vsub.s32 %v1861, %v2070
    %v2072 = vrot.slane %v1654, %v2071
    %v2073 = vsel %vm1866, %v2072, %v2068
    %v2074 = vlaneseq
    %v2075 = vshrl.u32 %v2074, 7
    %v2076 = vsub.s32 %v1868, %v2075
    %v2077 = vrot.slane %v1657, %v2076
    %v2078 = vsel %vm1873, %v2077, %v2073
    %v2079 = vlaneseq
    %v2080 = vshrl.u32 %v2079, 7
    %v2081 = vsub.s32 %v1875, %v2080
    %v2082 = vrot.slane %v1660, %v2081
    %v2083 = vsel %vm1880, %v2082, %v2078
    %v2084 = vlaneseq
    %v2085 = vshrl.u32 %v2084, 7
    %v2086 = vsub.s32 %v1882, %v2085
    %v2087 = vrot.slane %v1663, %v2086
    %v2088 = vsel %vm1887, %v2087, %v2083
    %v2089 = vlaneseq
    %v2090 = vshrl.u32 %v2089, 7
    %v2091 = vsub.s32 %v1889, %v2090
    %v2092 = vrot.slane %v1666, %v2091
    %v2093 = vsel %vm1894, %v2092, %v2088
    %v2094 = vlaneseq
    %v2095 = vshrl.u32 %v2094, 7
    %v2096 = vsub.s32 %v1896, %v2095
    %v2097 = vrot.slane %v1669, %v2096
    %v2098 = vsel %vm1901, %v2097, %v2093
    %v2099 = vlaneseq
    %v2100 = vshrl.u32 %v2099, 7
    %v2101 = vsub.s32 %v1903, %v2100
    %v2102 = vrot.slane %v1672, %v2101
    %v2103 = vsel %vm1908, %v2102, %v2098
    %2105 = vst [vmem:[#allocation6] sm:$0x1] %v2103
    // Predicated region
    $region18: #{tpu_custom_call.1} parent=1 // pred_check
      _
    $region19: #{tpu_custom_call.1} parent=1 // pred_check_branch
      %2107 = sbr.rel (0) target = $region21
    $region20: #{tpu_custom_call.1} parent=1 // pred_region
      %s2109 = ssub.s32 16, 16
      %2110 = vsyncadd [#allocation3], %s2109
      %s2112 = sshll.u32 [#allocation2], 4
      %s2113 = int_to_ptr.vmem [resolvable:$true] %s2112
      %2115 = dma.vmem_to_hbm [thread:$0]  %s2113, 16, %s4, [#allocation3]
    $region21: #{tpu_custom_call.1} parent=1 // pred_fallthru
      _
    // Predicated region
    $region22: #{tpu_custom_call.1} parent=1 // pred_check
      _
    $region23: #{tpu_custom_call.1} parent=1 // pred_check_branch
      %2117 = sbr.rel (0) target = $region25
    $region24: #{tpu_custom_call.1} parent=1 // pred_region
      %s2119 = ssub.s32 16, 16
      %2120 = vsyncadd [#allocation5], %s2119
      %s2122 = sshll.u32 [#allocation4], 4
      %s2123 = int_to_ptr.vmem [resolvable:$true] %s2122
      %2125 = dma.vmem_to_hbm [thread:$0]  %s2123, 16, %s5, [#allocation5]
    $region25: #{tpu_custom_call.1} parent=1 // pred_fallthru
      _
    // Predicated region
    $region26: #{tpu_custom_call.1} parent=1 // pred_check
      _
    $region27: #{tpu_custom_call.1} parent=1 // pred_check_branch
      %2127 = sbr.rel (0) target = $region29
    $region28: #{tpu_custom_call.1} parent=1 // pred_region
      %s2129 = ssub.s32 16, 16
      %2130 = vsyncadd [#allocation5], %s2129
      %s2132 = sshll.u32 [#allocation6], 4
      %s2133 = int_to_ptr.vmem [resolvable:$true] %s2132
      %2135 = dma.vmem_to_hbm [thread:$0]  %s2133, 16, %s6, [#allocation5]
    $region29: #{tpu_custom_call.1} parent=1 // pred_fallthru
      _
    // Predicated region
    $region30: #{tpu_custom_call.1} parent=1 // pred_check
      _
    $region31: #{tpu_custom_call.1} parent=1 // pred_check_branch
      %2137 = sbr.rel (0) target = $region33
    $region32: #{tpu_custom_call.1} parent=1 // pred_region
      %2138 = dma.done [#allocation3], 16
    $region33: #{tpu_custom_call.1} parent=1 // pred_fallthru
      _
    // Predicated region
    $region34: #{tpu_custom_call.1} parent=1 // pred_check
      _
    $region35: #{tpu_custom_call.1} parent=1 // pred_check_branch
      %2140 = sbr.rel (0) target = $region37
    $region36: #{tpu_custom_call.1} parent=1 // pred_region
      %2141 = dma.done [#allocation5], 16
    $region37: #{tpu_custom_call.1} parent=1 // pred_fallthru
      _
    // Predicated region
    $region38: #{tpu_custom_call.1} parent=1 // pred_check
      _
    $region39: #{tpu_custom_call.1} parent=1 // pred_check_branch
      %2143 = sbr.rel (0) target = $region41
    $region40: #{tpu_custom_call.1} parent=1 // pred_region
      %2144 = dma.done [#allocation5], 16
    $region41: #{tpu_custom_call.1} parent=1 // pred_fallthru
      _
    %2145 = vsyncpa [#allocation3], 1
    %2146 = vsyncpa [#allocation5], 1

</llo_original>
